<compile_context>
chip_gen: v7x
topology: tpu7x:2x2x1
jax: 0.10.0
libtpu: 0.0.40
codegen_flags: <defaults>
</compile_context>

<pallas_src>
import jax
import jax.numpy as jnp
from jax import lax
from jax.experimental import pallas as pl
from jax.experimental.pallas import tpu as pltpu

# ---- model hyperparameters (small, consistent with the module) ----
N = 2            # batch
C_IN = 4         # in_channels
C_OUT = 8        # out_channels
T = 16           # time_dim
V = 16           # joints_dim
KT, KV = 3, 3    # kernel_size (odd, odd)
STRIDE = 1
HIDDEN = 256
NUM_EXPERTS = 4
FEATURE = C_IN * T * V
BN_EPS = 1e-5
CK = C_IN * KT * KV
TV = T * V
NTV = N * TV


# --------------------------- fused Pallas kernel ------------------------------

def st_gcnn_fused_kernel(alpha_ref, xflat_ref, xcn_ref,
                         w0_ref, b0_ref, w1_ref, b1_ref, w2_ref, b2_ref,
                         a_ref, bd_ref, im_ref, wcat_ref, tcat_ref,
                         out_ref, as_scr, xs_scr):
    """Whole batch end-to-end in one invocation (no grid).

    xflat_ref: (N, FEATURE)        flattened input for the gating MLP
    xcn_ref:   (C_IN, N*T*V)       lane-dense input (graph conv + residual path)
    w*/b*:     gating MLP weights (f32, VMEM resident, DMA'd once)
    a_ref:     (E, V, T*V)         adjacency bank, A_perm[e, v, t*V+w] = A[e,t,v,w]
    bd_ref:    (T*V, T*V)          0/1 block-diagonal mask (precomputed)
    im_ref:    (KT*KV, N*T*V)      0/1 im2col edge-validity masks (precomputed)
    wcat_ref:  (C_OUT, CK+C_IN)    [BN-folded conv weights | BN-folded 1x1 residual]
    tcat_ref:  (C_OUT, 1)          combined folded bias (t1 + t2)
    alpha_ref: (1, 1) SMEM         PReLU slope
    as_scr:    (N, T*V, T*V) VMEM  per-sample block-diagonal mixed adjacency
    xs_scr:    (CK+C_IN, N*T*V)    im2col + residual stack (8-row-aligned stores)
    """
    def elu(h):
        # clamp the dead branch so exp never overflows
        return jnp.where(h > 0.0, h, jnp.exp(jnp.minimum(h, 0.0)) - 1.0)

    # ---- gating MLP + softmax, batched over the whole batch -> (N, E) ----
    xf = xflat_ref[...]                                                  # (N, F)
    h = elu(jnp.dot(xf, w0_ref[...], preferred_element_type=jnp.float32) + b0_ref[...])
    h = elu(jnp.dot(h, w1_ref[...], preferred_element_type=jnp.float32) + b1_ref[...])
    logits = jnp.dot(h, w2_ref[...], preferred_element_type=jnp.float32) + b2_ref[...]
    m = jnp.max(logits, axis=1, keepdims=True)
    e = jnp.exp(logits - m)
    gate = e / jnp.sum(e, axis=1, keepdims=True)                         # (N, E)

    a = a_ref[...]                                                       # (E, V, TV)

    # ---- per-sample: expert mix (VPU FMA), block-diag AS_bd, graph conv ----
    xg_parts = []
    for s in range(N):
        as_c = gate[s:s + 1, 0:1] * a[0]
        for ex in range(1, NUM_EXPERTS):
            as_c = as_c + gate[s:s + 1, ex:ex + 1] * a[ex]               # (V, TV)
        # one streaming masked build of the (TV, TV) block-diagonal adjacency;
        # it lives only in VMEM scratch (never held as a full vreg value).
        as_scr[s] = jnp.concatenate([as_c] * T, axis=0) * bd_ref[...]
        x_s = xcn_ref[:, pl.ds(s * TV, TV)]                              # (C_IN, TV)
        xg_parts.append(jnp.dot(x_s, as_scr[s],
                                preferred_element_type=jnp.float32))     # (C_IN, TV)
    xg = jnp.concatenate(xg_parts, axis=1)                               # (C_IN, N*TV)

    # ---- im2col: 9 lane-rolls * precomputed edge masks (cross-sample wraps
    #      land only on masked boundary positions), plus the residual path ----
    masks = im_ref[...]                                                  # (9, N*TV)
    pieces = []
    k = 0
    for kt in range(KT):
        dt = kt - (KT - 1) // 2
        for kv in range(KV):
            dv = kv - (KV - 1) // 2
            off = dt * V + dv
            shifted = xg if off == 0 else pltpu.roll(xg, shift=(-off) % NTV, axis=1)
            pieces.append(shifted * masks[k:k + 1, :])                   # (C_IN, N*TV)
            k += 1
    pieces.append(xcn_ref[...])                                          # residual path
    # 8-sublane-aligned paired stores into the (CK+C_IN, N*TV) scratch
    for i in range((CK + C_IN) // 8):
        xs_scr[pl.ds(8 * i, 8), :] = jnp.concatenate(
            [pieces[2 * i], pieces[2 * i + 1]], axis=0)

    # ---- fused tcn + residual (BN folded into weights) + PReLU: ONE matmul ----
    z = jnp.dot(wcat_ref[...], xs_scr[...],
                preferred_element_type=jnp.float32) + tcat_ref[...]      # (C_OUT, N*TV)
    alpha = alpha_ref[0, 0]
    zact = jnp.where(z > 0.0, z, alpha * z)
    for s in range(N):
        out_ref[s] = zact[:, s * TV:(s + 1) * TV]                        # (C_OUT, TV)


# --------------------------- wrapper / glue ----------------------------------

def st_gcnn_forward(x, p):
    # lane-dense views of the input
    x_flat = x.reshape(N, FEATURE)                                       # gating MLP
    x_cn = jnp.transpose(x, (1, 0, 2, 3)).reshape(C_IN, NTV)             # (C, N*T*V)

    # adjacency re-laid out lane-dense: A_perm[e, v, t*V + w] = A[e, t, v, w]
    a_perm = jnp.transpose(p['A'], (0, 2, 1, 3)).reshape(NUM_EXPERTS, V, TV)

    # fold conv biases + eval-mode BN into per-channel scale/shift, then fold
    # the scales straight into the conv weights (trace-time, tiny tensors).
    s1 = p['bn1_gamma'] / jnp.sqrt(p['bn1_var'] + BN_EPS)
    t1 = p['bn1_beta'] - s1 * p['bn1_mean'] + s1 * p['bc']
    s2 = p['bn2_gamma'] / jnp.sqrt(p['bn2_var'] + BN_EPS)
    t2 = p['bn2_beta'] - s2 * p['bn2_mean'] + s2 * p['br']
    # conv weight reordered tap-major (kt, kv, c) to match the in-kernel im2col
    wc_r = jnp.transpose(p['Wc'], (0, 2, 3, 1)).reshape(C_OUT, CK)       # (8, 36)
    wr_r = p['Wr'].reshape(C_OUT, C_IN)                                  # (8, 4)
    w_cat = jnp.concatenate([s1[:, None] * wc_r, s2[:, None] * wr_r], axis=1)  # (8, 40)
    t_cat = (t1 + t2).reshape(C_OUT, 1)
    alpha = p['prelu'].reshape(1, 1)

    # grid-invariant geometry, hoisted out of the kernel:
    r = jnp.arange(TV)
    bd_mask = ((r[:, None] // V) == (r[None, :] // V)).astype(jnp.float32)    # (TV, TV)
    tt = jnp.arange(TV) // V
    vv = jnp.arange(TV) % V
    m_list = []
    for kt in range(KT):
        dt = kt - (KT - 1) // 2
        for kv in range(KV):
            dv = kv - (KV - 1) // 2
            m_list.append((tt + dt >= 0) & (tt + dt < T) &
                          (vv + dv >= 0) & (vv + dv < V))
    im_mask = jnp.tile(jnp.stack(m_list).astype(jnp.float32), (1, N))         # (9, N*TV)

    vmem = pl.BlockSpec(memory_space=pltpu.MemorySpace.VMEM)
    smem = pl.BlockSpec(memory_space=pltpu.MemorySpace.SMEM)

    out = pl.pallas_call(
        st_gcnn_fused_kernel,
        out_shape=jax.ShapeDtypeStruct((N, C_OUT, TV), jnp.float32),
        in_specs=[smem] + [vmem] * 13,
        out_specs=vmem,
        scratch_shapes=[pltpu.VMEM((N, TV, TV), jnp.float32),
                        pltpu.VMEM((CK + C_IN, NTV), jnp.float32)],
    )(alpha, x_flat, x_cn, p['W0'], p['b0'], p['W1'], p['b1'],
      p['W2'], p['b2'], a_perm, bd_mask, im_mask, w_cat, t_cat)

    return out.reshape(N, C_OUT, T, V)


# --------------------------- reference (pure JAX) ----------------------------

def reference_forward(x, p):
    def elu(h):
        return jnp.where(h > 0.0, h, jnp.exp(jnp.minimum(h, 0.0)) - 1.0)
    g = x.reshape(N, FEATURE)
    h = elu(g @ p['W0'] + p['b0'])
    h = elu(h @ p['W1'] + p['b1'])
    h = h @ p['W2'] + p['b2']
    w = jax.nn.softmax(h, axis=1)
    AS = jnp.einsum('ne,etvw->ntvw', w, p['A'])
    xg = jnp.einsum('nctv,ntvw->nctw', x, AS)

    pt, pv = (KT - 1) // 2, (KV - 1) // 2
    y = lax.conv_general_dilated(xg, p['Wc'], (STRIDE, STRIDE),
                                 padding=[(pt, pt), (pv, pv)],
                                 dimension_numbers=('NCHW', 'OIHW', 'NCHW'))
    y = y + p['bc'][None, :, None, None]
    s1 = p['bn1_gamma'] / jnp.sqrt(p['bn1_var'] + BN_EPS)
    y = s1[None, :, None, None] * (y - p['bn1_mean'][None, :, None, None]) \
        + p['bn1_beta'][None, :, None, None]

    rres = lax.conv_general_dilated(x, p['Wr'], (1, 1), padding=[(0, 0), (0, 0)],
                                    dimension_numbers=('NCHW', 'OIHW', 'NCHW'))
    rres = rres + p['br'][None, :, None, None]
    s2 = p['bn2_gamma'] / jnp.sqrt(p['bn2_var'] + BN_EPS)
    rres = s2[None, :, None, None] * (rres - p['bn2_mean'][None, :, None, None]) \
        + p['bn2_beta'][None, :, None, None]

    z = y + rres
    a = p['prelu'][0]
    return jnp.where(z > 0.0, z, a * z)


# --------------------------- deterministic init -------------------------------

def init_params(key):
    ks = jax.random.split(key, 20)

    def u(k, shape, scale):
        return jax.random.uniform(k, shape, jnp.float32, -scale, scale)

    p = {}
    p['W0'] = u(ks[0], (FEATURE, HIDDEN), 1.0 / FEATURE ** 0.5)
    p['b0'] = u(ks[1], (1, HIDDEN), 1.0 / FEATURE ** 0.5)
    p['W1'] = u(ks[2], (HIDDEN, HIDDEN), 1.0 / HIDDEN ** 0.5)
    p['b1'] = u(ks[3], (1, HIDDEN), 1.0 / HIDDEN ** 0.5)
    p['W2'] = u(ks[4], (HIDDEN, NUM_EXPERTS), 1.0 / HIDDEN ** 0.5)
    p['b2'] = u(ks[5], (1, NUM_EXPERTS), 1.0 / HIDDEN ** 0.5)
    p['A'] = u(ks[6], (NUM_EXPERTS, T, V, V), 1.0 / V ** 0.5)
    p['Wc'] = u(ks[7], (C_OUT, C_IN, KT, KV), 1.0 / (C_IN * KT * KV) ** 0.5)
    p['bc'] = u(ks[8], (C_OUT,), 1.0 / (C_IN * KT * KV) ** 0.5)
    p['Wr'] = u(ks[9], (C_OUT, C_IN, 1, 1), 1.0 / C_IN ** 0.5)
    p['br'] = u(ks[10], (C_OUT,), 1.0 / C_IN ** 0.5)
    p['bn1_gamma'] = 1.0 + 0.1 * jax.random.normal(ks[11], (C_OUT,), jnp.float32)
    p['bn1_beta'] = 0.1 * jax.random.normal(ks[12], (C_OUT,), jnp.float32)
    p['bn1_mean'] = 0.1 * jax.random.normal(ks[13], (C_OUT,), jnp.float32)
    p['bn1_var'] = 1.0 + 0.1 * jnp.abs(jax.random.normal(ks[14], (C_OUT,), jnp.float32))
    p['bn2_gamma'] = 1.0 + 0.1 * jax.random.normal(ks[15], (C_OUT,), jnp.float32)
    p['bn2_beta'] = 0.1 * jax.random.normal(ks[16], (C_OUT,), jnp.float32)
    p['bn2_mean'] = 0.1 * jax.random.normal(ks[17], (C_OUT,), jnp.float32)
    p['bn2_var'] = 1.0 + 0.1 * jnp.abs(jax.random.normal(ks[18], (C_OUT,), jnp.float32))
    p['prelu'] = jnp.array([0.25], jnp.float32)
    return p


if __name__ == "__main__":
    key = jax.random.PRNGKey(0)
    k_x, k_p = jax.random.split(key)
    x = jax.random.normal(k_x, (N, C_IN, T, V), jnp.float32)
    params = init_params(k_p)

    out = jax.jit(st_gcnn_forward)(x, params)
    out = jax.block_until_ready(out)

    ref = reference_forward(x, params)
    assert out.shape == (N, C_OUT, T, V)
    assert jnp.allclose(out, ref, atol=2e-3, rtol=2e-3), \
        f"max abs err {jnp.max(jnp.abs(out - ref))}"

    print("KERNEL_OK")
</pallas_src>

<mosaic_0001>
module attributes {stable_mosaic.version = 11 : i64} {
  func.func @st_gcnn_fused_kernel(%arg0: memref<1x1xf32, #tpu.memory_space<smem>>, %arg1: memref<2x1024xf32, #tpu.memory_space<vmem>>, %arg2: memref<4x512xf32, #tpu.memory_space<vmem>>, %arg3: memref<1024x256xf32, #tpu.memory_space<vmem>>, %arg4: memref<1x256xf32, #tpu.memory_space<vmem>>, %arg5: memref<256x256xf32, #tpu.memory_space<vmem>>, %arg6: memref<1x256xf32, #tpu.memory_space<vmem>>, %arg7: memref<256x4xf32, #tpu.memory_space<vmem>>, %arg8: memref<1x4xf32, #tpu.memory_space<vmem>>, %arg9: memref<4x16x256xf32, #tpu.memory_space<vmem>>, %arg10: memref<256x256xf32, #tpu.memory_space<vmem>>, %arg11: memref<9x512xf32, #tpu.memory_space<vmem>>, %arg12: memref<8x40xf32, #tpu.memory_space<vmem>>, %arg13: memref<8x1xf32, #tpu.memory_space<vmem>>, %arg14: memref<2x8x256xf32, #tpu.memory_space<vmem>>, %arg15: memref<2x256x256xf32, #tpu.memory_space<vmem>>, %arg16: memref<40x512xf32, #tpu.memory_space<vmem>>) attributes {dimension_semantics = [], scalar_prefetch = 0 : i64, scratch_operands = 2 : i64, tpu.core_type = #tpu.core_type<tc>} {
    %c0 = arith.constant 0 : index
    %c0_0 = arith.constant 0 : index
    %0 = vector.load %arg1[%c0, %c0_0] : memref<2x1024xf32, #tpu.memory_space<vmem>>, vector<2x1024xf32>
    %c0_1 = arith.constant 0 : index
    %c0_2 = arith.constant 0 : index
    %1 = vector.load %arg3[%c0_1, %c0_2] : memref<1024x256xf32, #tpu.memory_space<vmem>>, vector<1024x256xf32>
    %cst = arith.constant dense<0.000000e+00> : vector<2x256xf32>
    %2 = tpu.matmul %0, %1, %cst {dimension_numbers = #tpu.dot_dimension_numbers<[1], [0], [0], [1], [0, 0, 1, 1], [], []>} : vector<2x1024xf32>, vector<1024x256xf32>, vector<2x256xf32> -> vector<2x256xf32>
    %c0_3 = arith.constant 0 : index
    %c0_4 = arith.constant 0 : index
    %3 = vector.load %arg4[%c0_3, %c0_4] : memref<1x256xf32, #tpu.memory_space<vmem>>, vector<1x256xf32>
    %4 = vector.broadcast %3 : vector<1x256xf32> to vector<2x256xf32>
    %5 = arith.addf %2, %4 : vector<2x256xf32>
    %cst_5 = arith.constant 0.000000e+00 : f32
    %6 = vector.broadcast %cst_5 : f32 to vector<2x256xf32>
    %7 = arith.cmpf ogt, %5, %6 : vector<2x256xf32>
    %cst_6 = arith.constant 0.000000e+00 : f32
    %8 = vector.broadcast %cst_6 : f32 to vector<2x256xf32>
    %9 = arith.minimumf %5, %8 : vector<2x256xf32>
    %10 = math.exp %9 : vector<2x256xf32>
    %cst_7 = arith.constant 1.000000e+00 : f32
    %11 = vector.broadcast %cst_7 : f32 to vector<2x256xf32>
    %12 = arith.subf %10, %11 : vector<2x256xf32>
    %13 = arith.select %7, %5, %12 : vector<2x256xi1>, vector<2x256xf32>
    %c0_8 = arith.constant 0 : index
    %c0_9 = arith.constant 0 : index
    %14 = vector.load %arg5[%c0_8, %c0_9] : memref<256x256xf32, #tpu.memory_space<vmem>>, vector<256x256xf32>
    %cst_10 = arith.constant dense<0.000000e+00> : vector<2x256xf32>
    %15 = tpu.matmul %13, %14, %cst_10 {dimension_numbers = #tpu.dot_dimension_numbers<[1], [0], [0], [1], [0, 0, 1, 1], [], []>} : vector<2x256xf32>, vector<256x256xf32>, vector<2x256xf32> -> vector<2x256xf32>
    %c0_11 = arith.constant 0 : index
    %c0_12 = arith.constant 0 : index
    %16 = vector.load %arg6[%c0_11, %c0_12] : memref<1x256xf32, #tpu.memory_space<vmem>>, vector<1x256xf32>
    %17 = vector.broadcast %16 : vector<1x256xf32> to vector<2x256xf32>
    %18 = arith.addf %15, %17 : vector<2x256xf32>
    %cst_13 = arith.constant 0.000000e+00 : f32
    %19 = vector.broadcast %cst_13 : f32 to vector<2x256xf32>
    %20 = arith.cmpf ogt, %18, %19 : vector<2x256xf32>
    %cst_14 = arith.constant 0.000000e+00 : f32
    %21 = vector.broadcast %cst_14 : f32 to vector<2x256xf32>
    %22 = arith.minimumf %18, %21 : vector<2x256xf32>
    %23 = math.exp %22 : vector<2x256xf32>
    %cst_15 = arith.constant 1.000000e+00 : f32
    %24 = vector.broadcast %cst_15 : f32 to vector<2x256xf32>
    %25 = arith.subf %23, %24 : vector<2x256xf32>
    %26 = arith.select %20, %18, %25 : vector<2x256xi1>, vector<2x256xf32>
    %c0_16 = arith.constant 0 : index
    %c0_17 = arith.constant 0 : index
    %27 = vector.load %arg7[%c0_16, %c0_17] : memref<256x4xf32, #tpu.memory_space<vmem>>, vector<256x4xf32>
    %cst_18 = arith.constant dense<0.000000e+00> : vector<2x4xf32>
    %28 = tpu.matmul %26, %27, %cst_18 {dimension_numbers = #tpu.dot_dimension_numbers<[1], [0], [0], [1], [0, 0, 1, 1], [], []>} : vector<2x256xf32>, vector<256x4xf32>, vector<2x4xf32> -> vector<2x4xf32>
    %c0_19 = arith.constant 0 : index
    %c0_20 = arith.constant 0 : index
    %29 = vector.load %arg8[%c0_19, %c0_20] : memref<1x4xf32, #tpu.memory_space<vmem>>, vector<1x4xf32>
    %30 = vector.broadcast %29 : vector<1x4xf32> to vector<2x4xf32>
    %31 = arith.addf %28, %30 : vector<2x4xf32>
    %cst_21 = arith.constant dense<0xFF800000> : vector<2xf32>
    %32 = vector.multi_reduction <maximumf>, %31, %cst_21 [1] : vector<2x4xf32> to vector<2xf32>
    %33 = vector.shape_cast %32 : vector<2xf32> to vector<2x1xf32>
    %34 = vector.broadcast %33 : vector<2x1xf32> to vector<2x4xf32>
    %35 = arith.subf %31, %34 : vector<2x4xf32>
    %36 = math.exp %35 : vector<2x4xf32>
    %cst_22 = arith.constant dense<0.000000e+00> : vector<2xf32>
    %37 = vector.multi_reduction <add>, %36, %cst_22 [1] : vector<2x4xf32> to vector<2xf32>
    %38 = vector.shape_cast %37 : vector<2xf32> to vector<2x1xf32>
    %39 = vector.broadcast %38 : vector<2x1xf32> to vector<2x4xf32>
    %40 = arith.divf %36, %39 : vector<2x4xf32>
    %c0_23 = arith.constant 0 : index
    %c0_24 = arith.constant 0 : index
    %c0_25 = arith.constant 0 : index
    %41 = vector.load %arg9[%c0_23, %c0_24, %c0_25] : memref<4x16x256xf32, #tpu.memory_space<vmem>>, vector<4x16x256xf32>
    %42 = vector.extract_strided_slice %40 {offsets = [0, 0], sizes = [1, 1], strides = [1, 1]} : vector<2x4xf32> to vector<1x1xf32>
    %43 = vector.extract_strided_slice %41 {offsets = [0, 0, 0], sizes = [1, 16, 256], strides = [1, 1, 1]} : vector<4x16x256xf32> to vector<1x16x256xf32>
    %44 = vector.shape_cast %43 : vector<1x16x256xf32> to vector<16x256xf32>
    %45 = vector.broadcast %42 : vector<1x1xf32> to vector<16x256xf32>
    %46 = arith.mulf %45, %44 : vector<16x256xf32>
    %47 = vector.extract_strided_slice %40 {offsets = [0, 1], sizes = [1, 1], strides = [1, 1]} : vector<2x4xf32> to vector<1x1xf32>
    %48 = vector.extract_strided_slice %41 {offsets = [1, 0, 0], sizes = [1, 16, 256], strides = [1, 1, 1]} : vector<4x16x256xf32> to vector<1x16x256xf32>
    %49 = vector.shape_cast %48 : vector<1x16x256xf32> to vector<16x256xf32>
    %50 = vector.broadcast %47 : vector<1x1xf32> to vector<16x256xf32>
    %51 = arith.mulf %50, %49 : vector<16x256xf32>
    %52 = arith.addf %46, %51 : vector<16x256xf32>
    %53 = vector.extract_strided_slice %40 {offsets = [0, 2], sizes = [1, 1], strides = [1, 1]} : vector<2x4xf32> to vector<1x1xf32>
    %54 = vector.extract_strided_slice %41 {offsets = [2, 0, 0], sizes = [1, 16, 256], strides = [1, 1, 1]} : vector<4x16x256xf32> to vector<1x16x256xf32>
    %55 = vector.shape_cast %54 : vector<1x16x256xf32> to vector<16x256xf32>
    %56 = vector.broadcast %53 : vector<1x1xf32> to vector<16x256xf32>
    %57 = arith.mulf %56, %55 : vector<16x256xf32>
    %58 = arith.addf %52, %57 : vector<16x256xf32>
    %59 = vector.extract_strided_slice %40 {offsets = [0, 3], sizes = [1, 1], strides = [1, 1]} : vector<2x4xf32> to vector<1x1xf32>
    %60 = vector.extract_strided_slice %41 {offsets = [3, 0, 0], sizes = [1, 16, 256], strides = [1, 1, 1]} : vector<4x16x256xf32> to vector<1x16x256xf32>
    %61 = vector.shape_cast %60 : vector<1x16x256xf32> to vector<16x256xf32>
    %62 = vector.broadcast %59 : vector<1x1xf32> to vector<16x256xf32>
    %63 = arith.mulf %62, %61 : vector<16x256xf32>
    %64 = arith.addf %58, %63 : vector<16x256xf32>
    %65 = tpu.concatenate %64, %64, %64, %64, %64, %64, %64, %64, %64, %64, %64, %64, %64, %64, %64, %64 in 0 : vector<16x256xf32>, vector<16x256xf32>, vector<16x256xf32>, vector<16x256xf32>, vector<16x256xf32>, vector<16x256xf32>, vector<16x256xf32>, vector<16x256xf32>, vector<16x256xf32>, vector<16x256xf32>, vector<16x256xf32>, vector<16x256xf32>, vector<16x256xf32>, vector<16x256xf32>, vector<16x256xf32>, vector<16x256xf32> -> vector<256x256xf32>
    %c0_26 = arith.constant 0 : index
    %c0_27 = arith.constant 0 : index
    %66 = vector.load %arg10[%c0_26, %c0_27] : memref<256x256xf32, #tpu.memory_space<vmem>>, vector<256x256xf32>
    %67 = arith.mulf %65, %66 : vector<256x256xf32>
    %c0_28 = arith.constant 0 : index
    %c0_29 = arith.constant 0 : index
    %c0_30 = arith.constant 0 : index
    %68 = vector.load %arg15[%c0_28, %c0_29, %c0_30] : memref<2x256x256xf32, #tpu.memory_space<vmem>>, vector<1x256x256xf32>
    %69 = vector.shape_cast %68 : vector<1x256x256xf32> to vector<256x256xf32>
    %70 = vector.shape_cast %67 : vector<256x256xf32> to vector<1x256x256xf32>
    tpu.vector_store %arg15[%c0_28, %c0_29, %c0_30], %70 {strides = array<i32>} : memref<2x256x256xf32, #tpu.memory_space<vmem>>, vector<1x256x256xf32>,
    %c0_31 = arith.constant 0 : index
    %c0_32 = arith.constant 0 : index
    %71 = vector.load %arg2[%c0_31, %c0_32] : memref<4x512xf32, #tpu.memory_space<vmem>>, vector<4x256xf32>
    %c0_33 = arith.constant 0 : index
    %c0_34 = arith.constant 0 : index
    %c0_35 = arith.constant 0 : index
    %72 = vector.load %arg15[%c0_33, %c0_34, %c0_35] : memref<2x256x256xf32, #tpu.memory_space<vmem>>, vector<1x256x256xf32>
    %73 = vector.shape_cast %72 : vector<1x256x256xf32> to vector<256x256xf32>
    %cst_36 = arith.constant dense<0.000000e+00> : vector<4x256xf32>
    %74 = tpu.matmul %71, %73, %cst_36 {dimension_numbers = #tpu.dot_dimension_numbers<[1], [0], [0], [1], [0, 0, 1, 1], [], []>} : vector<4x256xf32>, vector<256x256xf32>, vector<4x256xf32> -> vector<4x256xf32>
    %75 = vector.extract_strided_slice %40 {offsets = [1, 0], sizes = [1, 1], strides = [1, 1]} : vector<2x4xf32> to vector<1x1xf32>
    %76 = vector.extract_strided_slice %41 {offsets = [0, 0, 0], sizes = [1, 16, 256], strides = [1, 1, 1]} : vector<4x16x256xf32> to vector<1x16x256xf32>
    %77 = vector.shape_cast %76 : vector<1x16x256xf32> to vector<16x256xf32>
    %78 = vector.broadcast %75 : vector<1x1xf32> to vector<16x256xf32>
    %79 = arith.mulf %78, %77 : vector<16x256xf32>
    %80 = vector.extract_strided_slice %40 {offsets = [1, 1], sizes = [1, 1], strides = [1, 1]} : vector<2x4xf32> to vector<1x1xf32>
    %81 = vector.extract_strided_slice %41 {offsets = [1, 0, 0], sizes = [1, 16, 256], strides = [1, 1, 1]} : vector<4x16x256xf32> to vector<1x16x256xf32>
    %82 = vector.shape_cast %81 : vector<1x16x256xf32> to vector<16x256xf32>
    %83 = vector.broadcast %80 : vector<1x1xf32> to vector<16x256xf32>
    %84 = arith.mulf %83, %82 : vector<16x256xf32>
    %85 = arith.addf %79, %84 : vector<16x256xf32>
    %86 = vector.extract_strided_slice %40 {offsets = [1, 2], sizes = [1, 1], strides = [1, 1]} : vector<2x4xf32> to vector<1x1xf32>
    %87 = vector.extract_strided_slice %41 {offsets = [2, 0, 0], sizes = [1, 16, 256], strides = [1, 1, 1]} : vector<4x16x256xf32> to vector<1x16x256xf32>
    %88 = vector.shape_cast %87 : vector<1x16x256xf32> to vector<16x256xf32>
    %89 = vector.broadcast %86 : vector<1x1xf32> to vector<16x256xf32>
    %90 = arith.mulf %89, %88 : vector<16x256xf32>
    %91 = arith.addf %85, %90 : vector<16x256xf32>
    %92 = vector.extract_strided_slice %40 {offsets = [1, 3], sizes = [1, 1], strides = [1, 1]} : vector<2x4xf32> to vector<1x1xf32>
    %93 = vector.extract_strided_slice %41 {offsets = [3, 0, 0], sizes = [1, 16, 256], strides = [1, 1, 1]} : vector<4x16x256xf32> to vector<1x16x256xf32>
    %94 = vector.shape_cast %93 : vector<1x16x256xf32> to vector<16x256xf32>
    %95 = vector.broadcast %92 : vector<1x1xf32> to vector<16x256xf32>
    %96 = arith.mulf %95, %94 : vector<16x256xf32>
    %97 = arith.addf %91, %96 : vector<16x256xf32>
    %98 = tpu.concatenate %97, %97, %97, %97, %97, %97, %97, %97, %97, %97, %97, %97, %97, %97, %97, %97 in 0 : vector<16x256xf32>, vector<16x256xf32>, vector<16x256xf32>, vector<16x256xf32>, vector<16x256xf32>, vector<16x256xf32>, vector<16x256xf32>, vector<16x256xf32>, vector<16x256xf32>, vector<16x256xf32>, vector<16x256xf32>, vector<16x256xf32>, vector<16x256xf32>, vector<16x256xf32>, vector<16x256xf32>, vector<16x256xf32> -> vector<256x256xf32>
    %c0_37 = arith.constant 0 : index
    %c0_38 = arith.constant 0 : index
    %99 = vector.load %arg10[%c0_37, %c0_38] : memref<256x256xf32, #tpu.memory_space<vmem>>, vector<256x256xf32>
    %100 = arith.mulf %98, %99 : vector<256x256xf32>
    %c1 = arith.constant 1 : index
    %c0_39 = arith.constant 0 : index
    %c0_40 = arith.constant 0 : index
    %101 = vector.load %arg15[%c1, %c0_39, %c0_40] : memref<2x256x256xf32, #tpu.memory_space<vmem>>, vector<1x256x256xf32>
    %102 = vector.shape_cast %101 : vector<1x256x256xf32> to vector<256x256xf32>
    %103 = vector.shape_cast %100 : vector<256x256xf32> to vector<1x256x256xf32>
    tpu.vector_store %arg15[%c1, %c0_39, %c0_40], %103 {strides = array<i32>} : memref<2x256x256xf32, #tpu.memory_space<vmem>>, vector<1x256x256xf32>,
    %c0_41 = arith.constant 0 : index
    %c256 = arith.constant 256 : index
    %104 = vector.load %arg2[%c0_41, %c256] : memref<4x512xf32, #tpu.memory_space<vmem>>, vector<4x256xf32>
    %c1_42 = arith.constant 1 : index
    %c0_43 = arith.constant 0 : index
    %c0_44 = arith.constant 0 : index
    %105 = vector.load %arg15[%c1_42, %c0_43, %c0_44] : memref<2x256x256xf32, #tpu.memory_space<vmem>>, vector<1x256x256xf32>
    %106 = vector.shape_cast %105 : vector<1x256x256xf32> to vector<256x256xf32>
    %cst_45 = arith.constant dense<0.000000e+00> : vector<4x256xf32>
    %107 = tpu.matmul %104, %106, %cst_45 {dimension_numbers = #tpu.dot_dimension_numbers<[1], [0], [0], [1], [0, 0, 1, 1], [], []>} : vector<4x256xf32>, vector<256x256xf32>, vector<4x256xf32> -> vector<4x256xf32>
    %108 = tpu.concatenate %74, %107 in 1 : vector<4x256xf32>, vector<4x256xf32> -> vector<4x512xf32>
    %c0_46 = arith.constant 0 : index
    %c0_47 = arith.constant 0 : index
    %109 = vector.load %arg11[%c0_46, %c0_47] : memref<9x512xf32, #tpu.memory_space<vmem>>, vector<9x512xf32>
    %c17_i32 = arith.constant 17 : i32
    %110 = tpu.dynamic_rotate %108 by %c17_i32 dim 1 : vector<4x512xf32>, i32 -> vector<4x512xf32>
    %111 = vector.extract_strided_slice %109 {offsets = [0, 0], sizes = [1, 512], strides = [1, 1]} : vector<9x512xf32> to vector<1x512xf32>
    %112 = vector.broadcast %111 : vector<1x512xf32> to vector<4x512xf32>
    %113 = arith.mulf %110, %112 : vector<4x512xf32>
    %c16_i32 = arith.constant 16 : i32
    %114 = tpu.dynamic_rotate %108 by %c16_i32 dim 1 : vector<4x512xf32>, i32 -> vector<4x512xf32>
    %115 = vector.extract_strided_slice %109 {offsets = [1, 0], sizes = [1, 512], strides = [1, 1]} : vector<9x512xf32> to vector<1x512xf32>
    %116 = vector.broadcast %115 : vector<1x512xf32> to vector<4x512xf32>
    %117 = arith.mulf %114, %116 : vector<4x512xf32>
    %c15_i32 = arith.constant 15 : i32
    %118 = tpu.dynamic_rotate %108 by %c15_i32 dim 1 : vector<4x512xf32>, i32 -> vector<4x512xf32>
    %119 = vector.extract_strided_slice %109 {offsets = [2, 0], sizes = [1, 512], strides = [1, 1]} : vector<9x512xf32> to vector<1x512xf32>
    %120 = vector.broadcast %119 : vector<1x512xf32> to vector<4x512xf32>
    %121 = arith.mulf %118, %120 : vector<4x512xf32>
    %c1_i32 = arith.constant 1 : i32
    %122 = tpu.dynamic_rotate %108 by %c1_i32 dim 1 : vector<4x512xf32>, i32 -> vector<4x512xf32>
    %123 = vector.extract_strided_slice %109 {offsets = [3, 0], sizes = [1, 512], strides = [1, 1]} : vector<9x512xf32> to vector<1x512xf32>
    %124 = vector.broadcast %123 : vector<1x512xf32> to vector<4x512xf32>
    %125 = arith.mulf %122, %124 : vector<4x512xf32>
    %126 = vector.extract_strided_slice %109 {offsets = [4, 0], sizes = [1, 512], strides = [1, 1]} : vector<9x512xf32> to vector<1x512xf32>
    %127 = vector.broadcast %126 : vector<1x512xf32> to vector<4x512xf32>
    %128 = arith.mulf %108, %127 : vector<4x512xf32>
    %c511_i32 = arith.constant 511 : i32
    %129 = tpu.dynamic_rotate %108 by %c511_i32 dim 1 : vector<4x512xf32>, i32 -> vector<4x512xf32>
    %130 = vector.extract_strided_slice %109 {offsets = [5, 0], sizes = [1, 512], strides = [1, 1]} : vector<9x512xf32> to vector<1x512xf32>
    %131 = vector.broadcast %130 : vector<1x512xf32> to vector<4x512xf32>
    %132 = arith.mulf %129, %131 : vector<4x512xf32>
    %c497_i32 = arith.constant 497 : i32
    %133 = tpu.dynamic_rotate %108 by %c497_i32 dim 1 : vector<4x512xf32>, i32 -> vector<4x512xf32>
    %134 = vector.extract_strided_slice %109 {offsets = [6, 0], sizes = [1, 512], strides = [1, 1]} : vector<9x512xf32> to vector<1x512xf32>
    %135 = vector.broadcast %134 : vector<1x512xf32> to vector<4x512xf32>
    %136 = arith.mulf %133, %135 : vector<4x512xf32>
    %c496_i32 = arith.constant 496 : i32
    %137 = tpu.dynamic_rotate %108 by %c496_i32 dim 1 : vector<4x512xf32>, i32 -> vector<4x512xf32>
    %138 = vector.extract_strided_slice %109 {offsets = [7, 0], sizes = [1, 512], strides = [1, 1]} : vector<9x512xf32> to vector<1x512xf32>
    %139 = vector.broadcast %138 : vector<1x512xf32> to vector<4x512xf32>
    %140 = arith.mulf %137, %139 : vector<4x512xf32>
    %c495_i32 = arith.constant 495 : i32
    %141 = tpu.dynamic_rotate %108 by %c495_i32 dim 1 : vector<4x512xf32>, i32 -> vector<4x512xf32>
    %142 = vector.extract_strided_slice %109 {offsets = [8, 0], sizes = [1, 512], strides = [1, 1]} : vector<9x512xf32> to vector<1x512xf32>
    %143 = vector.broadcast %142 : vector<1x512xf32> to vector<4x512xf32>
    %144 = arith.mulf %141, %143 : vector<4x512xf32>
    %c0_48 = arith.constant 0 : index
    %c0_49 = arith.constant 0 : index
    %145 = vector.load %arg2[%c0_48, %c0_49] : memref<4x512xf32, #tpu.memory_space<vmem>>, vector<4x512xf32>
    %146 = tpu.concatenate %113, %117 in 0 : vector<4x512xf32>, vector<4x512xf32> -> vector<8x512xf32>
    %c0_50 = arith.constant 0 : index
    %c0_51 = arith.constant 0 : index
    %147 = vector.load %arg16[%c0_50, %c0_51] : memref<40x512xf32, #tpu.memory_space<vmem>>, vector<8x512xf32>
    tpu.vector_store %arg16[%c0_50, %c0_51], %146 {strides = array<i32>} : memref<40x512xf32, #tpu.memory_space<vmem>>, vector<8x512xf32>,
    %148 = tpu.concatenate %121, %125 in 0 : vector<4x512xf32>, vector<4x512xf32> -> vector<8x512xf32>
    %c8 = arith.constant 8 : index
    %c0_52 = arith.constant 0 : index
    %149 = vector.load %arg16[%c8, %c0_52] : memref<40x512xf32, #tpu.memory_space<vmem>>, vector<8x512xf32>
    tpu.vector_store %arg16[%c8, %c0_52], %148 {strides = array<i32>} : memref<40x512xf32, #tpu.memory_space<vmem>>, vector<8x512xf32>,
    %150 = tpu.concatenate %128, %132 in 0 : vector<4x512xf32>, vector<4x512xf32> -> vector<8x512xf32>
    %c16 = arith.constant 16 : index
    %c0_53 = arith.constant 0 : index
    %151 = vector.load %arg16[%c16, %c0_53] : memref<40x512xf32, #tpu.memory_space<vmem>>, vector<8x512xf32>
    tpu.vector_store %arg16[%c16, %c0_53], %150 {strides = array<i32>} : memref<40x512xf32, #tpu.memory_space<vmem>>, vector<8x512xf32>,
    %152 = tpu.concatenate %136, %140 in 0 : vector<4x512xf32>, vector<4x512xf32> -> vector<8x512xf32>
    %c24 = arith.constant 24 : index
    %c0_54 = arith.constant 0 : index
    %153 = vector.load %arg16[%c24, %c0_54] : memref<40x512xf32, #tpu.memory_space<vmem>>, vector<8x512xf32>
    tpu.vector_store %arg16[%c24, %c0_54], %152 {strides = array<i32>} : memref<40x512xf32, #tpu.memory_space<vmem>>, vector<8x512xf32>,
    %154 = tpu.concatenate %144, %145 in 0 : vector<4x512xf32>, vector<4x512xf32> -> vector<8x512xf32>
    %c32 = arith.constant 32 : index
    %c0_55 = arith.constant 0 : index
    %155 = vector.load %arg16[%c32, %c0_55] : memref<40x512xf32, #tpu.memory_space<vmem>>, vector<8x512xf32>
    tpu.vector_store %arg16[%c32, %c0_55], %154 {strides = array<i32>} : memref<40x512xf32, #tpu.memory_space<vmem>>, vector<8x512xf32>,
    %c0_56 = arith.constant 0 : index
    %c0_57 = arith.constant 0 : index
    %156 = vector.load %arg12[%c0_56, %c0_57] : memref<8x40xf32, #tpu.memory_space<vmem>>, vector<8x40xf32>
    %c0_58 = arith.constant 0 : index
    %c0_59 = arith.constant 0 : index
    %157 = vector.load %arg16[%c0_58, %c0_59] : memref<40x512xf32, #tpu.memory_space<vmem>>, vector<40x512xf32>
    %cst_60 = arith.constant dense<0.000000e+00> : vector<8x512xf32>
    %158 = tpu.matmul %156, %157, %cst_60 {dimension_numbers = #tpu.dot_dimension_numbers<[1], [0], [0], [1], [0, 0, 1, 1], [], []>} : vector<8x40xf32>, vector<40x512xf32>, vector<8x512xf32> -> vector<8x512xf32>
    %c0_61 = arith.constant 0 : index
    %c0_62 = arith.constant 0 : index
    %159 = vector.load %arg13[%c0_61, %c0_62] : memref<8x1xf32, #tpu.memory_space<vmem>>, vector<8x1xf32>
    %160 = vector.broadcast %159 : vector<8x1xf32> to vector<8x512xf32>
    %161 = arith.addf %158, %160 : vector<8x512xf32>
    %c0_63 = arith.constant 0 : index
    %c0_64 = arith.constant 0 : index
    %162 = memref.load %arg0[%c0_63, %c0_64] : memref<1x1xf32, #tpu.memory_space<smem>>
    %cst_65 = arith.constant 0.000000e+00 : f32
    %163 = vector.broadcast %cst_65 : f32 to vector<8x512xf32>
    %164 = arith.cmpf ogt, %161, %163 : vector<8x512xf32>
    %165 = vector.broadcast %162 : f32 to vector<8x512xf32>
    %166 = arith.mulf %165, %161 : vector<8x512xf32>
    %167 = arith.select %164, %161, %166 : vector<8x512xi1>, vector<8x512xf32>
    %168 = vector.extract_strided_slice %167 {offsets = [0, 0], sizes = [8, 256], strides = [1, 1]} : vector<8x512xf32> to vector<8x256xf32>
    %c0_66 = arith.constant 0 : index
    %c0_67 = arith.constant 0 : index
    %c0_68 = arith.constant 0 : index
    %169 = vector.load %arg14[%c0_66, %c0_67, %c0_68] : memref<2x8x256xf32, #tpu.memory_space<vmem>>, vector<1x8x256xf32>
    %170 = vector.shape_cast %169 : vector<1x8x256xf32> to vector<8x256xf32>
    %171 = vector.shape_cast %168 : vector<8x256xf32> to vector<1x8x256xf32>
    tpu.vector_store %arg14[%c0_66, %c0_67, %c0_68], %171 {strides = array<i32>} : memref<2x8x256xf32, #tpu.memory_space<vmem>>, vector<1x8x256xf32>,
    %172 = vector.extract_strided_slice %167 {offsets = [0, 256], sizes = [8, 256], strides = [1, 1]} : vector<8x512xf32> to vector<8x256xf32>
    %c1_69 = arith.constant 1 : index
    %c0_70 = arith.constant 0 : index
    %c0_71 = arith.constant 0 : index
    %173 = vector.load %arg14[%c1_69, %c0_70, %c0_71] : memref<2x8x256xf32, #tpu.memory_space<vmem>>, vector<1x8x256xf32>
    %174 = vector.shape_cast %173 : vector<1x8x256xf32> to vector<8x256xf32>
    %175 = vector.shape_cast %172 : vector<8x256xf32> to vector<1x8x256xf32>
    tpu.vector_store %arg14[%c1_69, %c0_70, %c0_71], %175 {strides = array<i32>} : memref<2x8x256xf32, #tpu.memory_space<vmem>>, vector<1x8x256xf32>,
    return
  }
}

</mosaic_0001>

<llo_original>
// kernel: st_gcnn_forward.1
$region0: #{st_gcnn_forward.1}
  #allocation0 [shape = 'u32[]', space=smem, size = 0x4, offset = 0x4, fixed_abs, tag = 'smem constant byte address 0x4 - core index']
  #allocation1 [shape = 'u32[144,128]{1,0:T(1,128)}', space=vmem, size = 0x12000, scoped, tag = 'internal scratch']
  #allocation2 [shape = 'f32[2,256,256]{2,1,0:T(8,128)}', space=vmem, size = 0x80000, scoped, tag = 'scratch operand']
  #allocation3 [shape = 'f32[40,512]{1,0:T(8,128)}', space=vmem, size = 0x14000, scoped, tag = 'scratch operand']
  #allocation4 [shape = 'f32[1,1]{1,0:T(1,128)S(6)}', space=smem, size = 0x200, scoped, tag = 'scoped memory for st_gcnn_forward.1']
  %s0 = inlined_call_operand.<no memory space> [shape: f32[1,1], index: 0, kind: input, shape index: {}]
  %s1 = inlined_call_operand.vmem [shape: f32[2,1024], index: 1, kind: input, shape index: {}]
  %s2 = inlined_call_operand.vmem [shape: f32[4,512], index: 2, kind: input, shape index: {}]
  %s3 = inlined_call_operand.vmem [shape: f32[1024,256], index: 3, kind: input, shape index: {}]
  %s4 = inlined_call_operand.vmem [shape: f32[1,256], index: 4, kind: input, shape index: {}]
  %s5 = inlined_call_operand.vmem [shape: f32[256,256], index: 5, kind: input, shape index: {}]
  %s6 = inlined_call_operand.vmem [shape: f32[1,256], index: 6, kind: input, shape index: {}]
  %s7 = inlined_call_operand.vmem [shape: f32[256,4], index: 7, kind: input, shape index: {}]
  %s8 = inlined_call_operand.vmem [shape: f32[1,4], index: 8, kind: input, shape index: {}]
  %s9 = inlined_call_operand.vmem [shape: f32[4,16,256], index: 9, kind: input, shape index: {}]
  %s10 = inlined_call_operand.vmem [shape: f32[256,256], index: 10, kind: input, shape index: {}]
  %s11 = inlined_call_operand.vmem [shape: f32[9,512], index: 11, kind: input, shape index: {}]
  %s12 = inlined_call_operand.vmem [shape: f32[8,40], index: 12, kind: input, shape index: {}]
  %s13 = inlined_call_operand.vmem [shape: f32[8,1], index: 13, kind: input, shape index: {}]
  %s14 = inlined_call_operand.vmem [shape: f32[2,8,256], index: 14, kind: output, shape index: {}]
  %s15 = sld [smem:[#allocation0]]
  $region66: #{st_gcnn_forward.1} parent=0
    _
  %s17 = ssub.s32 1, %s15
  %s18 = scalar_select 0, %s17, %s15
  %19 = sst [smem:[#allocation4]] %s0
  // Predicated region
  $region2: #{st_gcnn_forward.1} parent=0 // pred_check
    _
  $region3: #{st_gcnn_forward.1} parent=0 // pred_check_branch
    %21 = sbr.rel (0) target = $region5
  $region4: #{st_gcnn_forward.1} parent=0 // pred_region
    _
  $region5: #{st_gcnn_forward.1} parent=0 // pred_fallthru
    _
  // Predicated region
  $region6: #{st_gcnn_forward.1} parent=0 // pred_check
    _
  $region7: #{st_gcnn_forward.1} parent=0 // pred_check_branch
    %23 = sbr.rel (0) target = $region9
  $region8: #{st_gcnn_forward.1} parent=0 // pred_region
    _
  $region9: #{st_gcnn_forward.1} parent=0 // pred_fallthru
    _
  // Predicated region
  $region10: #{st_gcnn_forward.1} parent=0 // pred_check
    _
  $region11: #{st_gcnn_forward.1} parent=0 // pred_check_branch
    %25 = sbr.rel (0) target = $region13
  $region12: #{st_gcnn_forward.1} parent=0 // pred_region
    _
  $region13: #{st_gcnn_forward.1} parent=0 // pred_fallthru
    _
  // Predicated region
  $region14: #{st_gcnn_forward.1} parent=0 // pred_check
    _
  $region15: #{st_gcnn_forward.1} parent=0 // pred_check_branch
    %27 = sbr.rel (0) target = $region17
  $region16: #{st_gcnn_forward.1} parent=0 // pred_region
    _
  $region17: #{st_gcnn_forward.1} parent=0 // pred_fallthru
    _
  // Predicated region
  $region18: #{st_gcnn_forward.1} parent=0 // pred_check
    _
  $region19: #{st_gcnn_forward.1} parent=0 // pred_check_branch
    %29 = sbr.rel (0) target = $region21
  $region20: #{st_gcnn_forward.1} parent=0 // pred_region
    _
  $region21: #{st_gcnn_forward.1} parent=0 // pred_fallthru
    _
  // Predicated region
  $region22: #{st_gcnn_forward.1} parent=0 // pred_check
    _
  $region23: #{st_gcnn_forward.1} parent=0 // pred_check_branch
    %31 = sbr.rel (0) target = $region25
  $region24: #{st_gcnn_forward.1} parent=0 // pred_region
    _
  $region25: #{st_gcnn_forward.1} parent=0 // pred_fallthru
    _
  // Predicated region
  $region26: #{st_gcnn_forward.1} parent=0 // pred_check
    _
  $region27: #{st_gcnn_forward.1} parent=0 // pred_check_branch
    %33 = sbr.rel (0) target = $region29
  $region28: #{st_gcnn_forward.1} parent=0 // pred_region
    _
  $region29: #{st_gcnn_forward.1} parent=0 // pred_fallthru
    _
  // Predicated region
  $region30: #{st_gcnn_forward.1} parent=0 // pred_check
    _
  $region31: #{st_gcnn_forward.1} parent=0 // pred_check_branch
    %35 = sbr.rel (0) target = $region33
  $region32: #{st_gcnn_forward.1} parent=0 // pred_region
    _
  $region33: #{st_gcnn_forward.1} parent=0 // pred_fallthru
    _
  // Predicated region
  $region34: #{st_gcnn_forward.1} parent=0 // pred_check
    _
  $region35: #{st_gcnn_forward.1} parent=0 // pred_check_branch
    %37 = sbr.rel (0) target = $region37
  $region36: #{st_gcnn_forward.1} parent=0 // pred_region
    _
  $region37: #{st_gcnn_forward.1} parent=0 // pred_fallthru
    _
  // Predicated region
  $region38: #{st_gcnn_forward.1} parent=0 // pred_check
    _
  $region39: #{st_gcnn_forward.1} parent=0 // pred_check_branch
    %39 = sbr.rel (0) target = $region41
  $region40: #{st_gcnn_forward.1} parent=0 // pred_region
    _
  $region41: #{st_gcnn_forward.1} parent=0 // pred_fallthru
    _
  // Predicated region
  $region42: #{st_gcnn_forward.1} parent=0 // pred_check
    _
  $region43: #{st_gcnn_forward.1} parent=0 // pred_check_branch
    %41 = sbr.rel (0) target = $region45
  $region44: #{st_gcnn_forward.1} parent=0 // pred_region
    _
  $region45: #{st_gcnn_forward.1} parent=0 // pred_fallthru
    _
  // Predicated region
  $region46: #{st_gcnn_forward.1} parent=0 // pred_check
    _
  $region47: #{st_gcnn_forward.1} parent=0 // pred_check_branch
    %43 = sbr.rel (0) target = $region49
  $region48: #{st_gcnn_forward.1} parent=0 // pred_region
    _
  $region49: #{st_gcnn_forward.1} parent=0 // pred_fallthru
    _
  // Predicated region
  $region50: #{st_gcnn_forward.1} parent=0 // pred_check
    _
  $region51: #{st_gcnn_forward.1} parent=0 // pred_check_branch
    %45 = sbr.rel (0) target = $region53
  $region52: #{st_gcnn_forward.1} parent=0 // pred_region
    _
  $region53: #{st_gcnn_forward.1} parent=0 // pred_fallthru
    _
  // Predicated region
  $region54: #{st_gcnn_forward.1} parent=0 // pred_check
    _
  $region55: #{st_gcnn_forward.1} parent=0 // pred_check_branch
    %47 = sbr.rel (0) target = $region57
  $region56: #{st_gcnn_forward.1} parent=0 // pred_region
    _
  $region57: #{st_gcnn_forward.1} parent=0 // pred_fallthru
    _
  %v48 = vld [vmem:[%s1] sm:$0xff]
  %v49 = vld [vmem:[%s1 + $0x8] sm:$0xff]
  %v50 = vld [vmem:[%s3] sm:$0xff]
  %v51 = vld [vmem:[%s3 + $0x8] sm:$0xff]
  %v52 = vld [vmem:[%s3 + $0x10] sm:$0xff]
  %v53 = vld [vmem:[%s3 + $0x18] sm:$0xff]
  %v54 = vld [vmem:[%s3 + $0x20] sm:$0xff]
  %v55 = vld [vmem:[%s3 + $0x28] sm:$0xff]
  %v56 = vld [vmem:[%s3 + $0x30] sm:$0xff]
  %v57 = vld [vmem:[%s3 + $0x38] sm:$0xff]
  %v58 = vld [vmem:[%s3 + $0x40] sm:$0xff]
  %v59 = vld [vmem:[%s3 + $0x48] sm:$0xff]
  %v60 = vld [vmem:[%s3 + $0x50] sm:$0xff]
  %v61 = vld [vmem:[%s3 + $0x58] sm:$0xff]
  %v62 = vld [vmem:[%s3 + $0x60] sm:$0xff]
  %v63 = vld [vmem:[%s3 + $0x68] sm:$0xff]
  %v64 = vld [vmem:[%s3 + $0x70] sm:$0xff]
  %v65 = vld [vmem:[%s3 + $0x78] sm:$0xff]
  %v66 = vld [vmem:[%s3 + $0x80] sm:$0xff]
  %v67 = vld [vmem:[%s3 + $0x88] sm:$0xff]
  %v68 = vld [vmem:[%s3 + $0x90] sm:$0xff]
  %v69 = vld [vmem:[%s3 + $0x98] sm:$0xff]
  %v70 = vld [vmem:[%s3 + $0xa0] sm:$0xff]
  %v71 = vld [vmem:[%s3 + $0xa8] sm:$0xff]
  %v72 = vld [vmem:[%s3 + $0xb0] sm:$0xff]
  %v73 = vld [vmem:[%s3 + $0xb8] sm:$0xff]
  %v74 = vld [vmem:[%s3 + $0xc0] sm:$0xff]
  %v75 = vld [vmem:[%s3 + $0xc8] sm:$0xff]
  %v76 = vld [vmem:[%s3 + $0xd0] sm:$0xff]
  %v77 = vld [vmem:[%s3 + $0xd8] sm:$0xff]
  %v78 = vld [vmem:[%s3 + $0xe0] sm:$0xff]
  %v79 = vld [vmem:[%s3 + $0xe8] sm:$0xff]
  %v80 = vld [vmem:[%s3 + $0xf0] sm:$0xff]
  %v81 = vld [vmem:[%s3 + $0xf8] sm:$0xff]
  %v82 = vld [vmem:[%s3 + $0x100] sm:$0xff]
  %v83 = vld [vmem:[%s3 + $0x108] sm:$0xff]
  %v84 = vld [vmem:[%s3 + $0x110] sm:$0xff]
  %v85 = vld [vmem:[%s3 + $0x118] sm:$0xff]
  %v86 = vld [vmem:[%s3 + $0x120] sm:$0xff]
  %v87 = vld [vmem:[%s3 + $0x128] sm:$0xff]
  %v88 = vld [vmem:[%s3 + $0x130] sm:$0xff]
  %v89 = vld [vmem:[%s3 + $0x138] sm:$0xff]
  %v90 = vld [vmem:[%s3 + $0x140] sm:$0xff]
  %v91 = vld [vmem:[%s3 + $0x148] sm:$0xff]
  %v92 = vld [vmem:[%s3 + $0x150] sm:$0xff]
  %v93 = vld [vmem:[%s3 + $0x158] sm:$0xff]
  %v94 = vld [vmem:[%s3 + $0x160] sm:$0xff]
  %v95 = vld [vmem:[%s3 + $0x168] sm:$0xff]
  %v96 = vld [vmem:[%s3 + $0x170] sm:$0xff]
  %v97 = vld [vmem:[%s3 + $0x178] sm:$0xff]
  %v98 = vld [vmem:[%s3 + $0x180] sm:$0xff]
  %v99 = vld [vmem:[%s3 + $0x188] sm:$0xff]
  %v100 = vld [vmem:[%s3 + $0x190] sm:$0xff]
  %v101 = vld [vmem:[%s3 + $0x198] sm:$0xff]
  %v102 = vld [vmem:[%s3 + $0x1a0] sm:$0xff]
  %v103 = vld [vmem:[%s3 + $0x1a8] sm:$0xff]
  %v104 = vld [vmem:[%s3 + $0x1b0] sm:$0xff]
  %v105 = vld [vmem:[%s3 + $0x1b8] sm:$0xff]
  %v106 = vld [vmem:[%s3 + $0x1c0] sm:$0xff]
  %v107 = vld [vmem:[%s3 + $0x1c8] sm:$0xff]
  %v108 = vld [vmem:[%s3 + $0x1d0] sm:$0xff]
  %v109 = vld [vmem:[%s3 + $0x1d8] sm:$0xff]
  %v110 = vld [vmem:[%s3 + $0x1e0] sm:$0xff]
  %v111 = vld [vmem:[%s3 + $0x1e8] sm:$0xff]
  %v112 = vld [vmem:[%s3 + $0x1f0] sm:$0xff]
  %v113 = vld [vmem:[%s3 + $0x1f8] sm:$0xff]
  %v114 = vld [vmem:[%s3 + $0x200] sm:$0xff]
  %v115 = vld [vmem:[%s3 + $0x208] sm:$0xff]
  %v116 = vld [vmem:[%s3 + $0x210] sm:$0xff]
  %v117 = vld [vmem:[%s3 + $0x218] sm:$0xff]
  %v118 = vld [vmem:[%s3 + $0x220] sm:$0xff]
  %v119 = vld [vmem:[%s3 + $0x228] sm:$0xff]
  %v120 = vld [vmem:[%s3 + $0x230] sm:$0xff]
  %v121 = vld [vmem:[%s3 + $0x238] sm:$0xff]
  %v122 = vld [vmem:[%s3 + $0x240] sm:$0xff]
  %v123 = vld [vmem:[%s3 + $0x248] sm:$0xff]
  %v124 = vld [vmem:[%s3 + $0x250] sm:$0xff]
  %v125 = vld [vmem:[%s3 + $0x258] sm:$0xff]
  %v126 = vld [vmem:[%s3 + $0x260] sm:$0xff]
  %v127 = vld [vmem:[%s3 + $0x268] sm:$0xff]
  %v128 = vld [vmem:[%s3 + $0x270] sm:$0xff]
  %v129 = vld [vmem:[%s3 + $0x278] sm:$0xff]
  %v130 = vld [vmem:[%s3 + $0x280] sm:$0xff]
  %v131 = vld [vmem:[%s3 + $0x288] sm:$0xff]
  %v132 = vld [vmem:[%s3 + $0x290] sm:$0xff]
  %v133 = vld [vmem:[%s3 + $0x298] sm:$0xff]
  %v134 = vld [vmem:[%s3 + $0x2a0] sm:$0xff]
  %v135 = vld [vmem:[%s3 + $0x2a8] sm:$0xff]
  %v136 = vld [vmem:[%s3 + $0x2b0] sm:$0xff]
  %v137 = vld [vmem:[%s3 + $0x2b8] sm:$0xff]
  %v138 = vld [vmem:[%s3 + $0x2c0] sm:$0xff]
  %v139 = vld [vmem:[%s3 + $0x2c8] sm:$0xff]
  %v140 = vld [vmem:[%s3 + $0x2d0] sm:$0xff]
  %v141 = vld [vmem:[%s3 + $0x2d8] sm:$0xff]
  %v142 = vld [vmem:[%s3 + $0x2e0] sm:$0xff]
  %v143 = vld [vmem:[%s3 + $0x2e8] sm:$0xff]
  %v144 = vld [vmem:[%s3 + $0x2f0] sm:$0xff]
  %v145 = vld [vmem:[%s3 + $0x2f8] sm:$0xff]
  %v146 = vld [vmem:[%s3 + $0x300] sm:$0xff]
  %v147 = vld [vmem:[%s3 + $0x308] sm:$0xff]
  %v148 = vld [vmem:[%s3 + $0x310] sm:$0xff]
  %v149 = vld [vmem:[%s3 + $0x318] sm:$0xff]
  %v150 = vld [vmem:[%s3 + $0x320] sm:$0xff]
  %v151 = vld [vmem:[%s3 + $0x328] sm:$0xff]
  %v152 = vld [vmem:[%s3 + $0x330] sm:$0xff]
  %v153 = vld [vmem:[%s3 + $0x338] sm:$0xff]
  %v154 = vld [vmem:[%s3 + $0x340] sm:$0xff]
  %v155 = vld [vmem:[%s3 + $0x348] sm:$0xff]
  %v156 = vld [vmem:[%s3 + $0x350] sm:$0xff]
  %v157 = vld [vmem:[%s3 + $0x358] sm:$0xff]
  %v158 = vld [vmem:[%s3 + $0x360] sm:$0xff]
  %v159 = vld [vmem:[%s3 + $0x368] sm:$0xff]
  %v160 = vld [vmem:[%s3 + $0x370] sm:$0xff]
  %v161 = vld [vmem:[%s3 + $0x378] sm:$0xff]
  %v162 = vld [vmem:[%s3 + $0x380] sm:$0xff]
  %v163 = vld [vmem:[%s3 + $0x388] sm:$0xff]
  %v164 = vld [vmem:[%s3 + $0x390] sm:$0xff]
  %v165 = vld [vmem:[%s3 + $0x398] sm:$0xff]
  %v166 = vld [vmem:[%s3 + $0x3a0] sm:$0xff]
  %v167 = vld [vmem:[%s3 + $0x3a8] sm:$0xff]
  %v168 = vld [vmem:[%s3 + $0x3b0] sm:$0xff]
  %v169 = vld [vmem:[%s3 + $0x3b8] sm:$0xff]
  %v170 = vld [vmem:[%s3 + $0x3c0] sm:$0xff]
  %v171 = vld [vmem:[%s3 + $0x3c8] sm:$0xff]
  %v172 = vld [vmem:[%s3 + $0x3d0] sm:$0xff]
  %v173 = vld [vmem:[%s3 + $0x3d8] sm:$0xff]
  %v174 = vld [vmem:[%s3 + $0x3e0] sm:$0xff]
  %v175 = vld [vmem:[%s3 + $0x3e8] sm:$0xff]
  %v176 = vld [vmem:[%s3 + $0x3f0] sm:$0xff]
  %v177 = vld [vmem:[%s3 + $0x3f8] sm:$0xff]
  %v178 = vld [vmem:[%s3 + $0x400] sm:$0xff]
  %v179 = vld [vmem:[%s3 + $0x408] sm:$0xff]
  %v180 = vld [vmem:[%s3 + $0x410] sm:$0xff]
  %v181 = vld [vmem:[%s3 + $0x418] sm:$0xff]
  %v182 = vld [vmem:[%s3 + $0x420] sm:$0xff]
  %v183 = vld [vmem:[%s3 + $0x428] sm:$0xff]
  %v184 = vld [vmem:[%s3 + $0x430] sm:$0xff]
  %v185 = vld [vmem:[%s3 + $0x438] sm:$0xff]
  %v186 = vld [vmem:[%s3 + $0x440] sm:$0xff]
  %v187 = vld [vmem:[%s3 + $0x448] sm:$0xff]
  %v188 = vld [vmem:[%s3 + $0x450] sm:$0xff]
  %v189 = vld [vmem:[%s3 + $0x458] sm:$0xff]
  %v190 = vld [vmem:[%s3 + $0x460] sm:$0xff]
  %v191 = vld [vmem:[%s3 + $0x468] sm:$0xff]
  %v192 = vld [vmem:[%s3 + $0x470] sm:$0xff]
  %v193 = vld [vmem:[%s3 + $0x478] sm:$0xff]
  %v194 = vld [vmem:[%s3 + $0x480] sm:$0xff]
  %v195 = vld [vmem:[%s3 + $0x488] sm:$0xff]
  %v196 = vld [vmem:[%s3 + $0x490] sm:$0xff]
  %v197 = vld [vmem:[%s3 + $0x498] sm:$0xff]
  %v198 = vld [vmem:[%s3 + $0x4a0] sm:$0xff]
  %v199 = vld [vmem:[%s3 + $0x4a8] sm:$0xff]
  %v200 = vld [vmem:[%s3 + $0x4b0] sm:$0xff]
  %v201 = vld [vmem:[%s3 + $0x4b8] sm:$0xff]
  %v202 = vld [vmem:[%s3 + $0x4c0] sm:$0xff]
  %v203 = vld [vmem:[%s3 + $0x4c8] sm:$0xff]
  %v204 = vld [vmem:[%s3 + $0x4d0] sm:$0xff]
  %v205 = vld [vmem:[%s3 + $0x4d8] sm:$0xff]
  %v206 = vld [vmem:[%s3 + $0x4e0] sm:$0xff]
  %v207 = vld [vmem:[%s3 + $0x4e8] sm:$0xff]
  %v208 = vld [vmem:[%s3 + $0x4f0] sm:$0xff]
  %v209 = vld [vmem:[%s3 + $0x4f8] sm:$0xff]
  %v210 = vld [vmem:[%s3 + $0x500] sm:$0xff]
  %v211 = vld [vmem:[%s3 + $0x508] sm:$0xff]
  %v212 = vld [vmem:[%s3 + $0x510] sm:$0xff]
  %v213 = vld [vmem:[%s3 + $0x518] sm:$0xff]
  %v214 = vld [vmem:[%s3 + $0x520] sm:$0xff]
  %v215 = vld [vmem:[%s3 + $0x528] sm:$0xff]
  %v216 = vld [vmem:[%s3 + $0x530] sm:$0xff]
  %v217 = vld [vmem:[%s3 + $0x538] sm:$0xff]
  %v218 = vld [vmem:[%s3 + $0x540] sm:$0xff]
  %v219 = vld [vmem:[%s3 + $0x548] sm:$0xff]
  %v220 = vld [vmem:[%s3 + $0x550] sm:$0xff]
  %v221 = vld [vmem:[%s3 + $0x558] sm:$0xff]
  %v222 = vld [vmem:[%s3 + $0x560] sm:$0xff]
  %v223 = vld [vmem:[%s3 + $0x568] sm:$0xff]
  %v224 = vld [vmem:[%s3 + $0x570] sm:$0xff]
  %v225 = vld [vmem:[%s3 + $0x578] sm:$0xff]
  %v226 = vld [vmem:[%s3 + $0x580] sm:$0xff]
  %v227 = vld [vmem:[%s3 + $0x588] sm:$0xff]
  %v228 = vld [vmem:[%s3 + $0x590] sm:$0xff]
  %v229 = vld [vmem:[%s3 + $0x598] sm:$0xff]
  %v230 = vld [vmem:[%s3 + $0x5a0] sm:$0xff]
  %v231 = vld [vmem:[%s3 + $0x5a8] sm:$0xff]
  %v232 = vld [vmem:[%s3 + $0x5b0] sm:$0xff]
  %v233 = vld [vmem:[%s3 + $0x5b8] sm:$0xff]
  %v234 = vld [vmem:[%s3 + $0x5c0] sm:$0xff]
  %v235 = vld [vmem:[%s3 + $0x5c8] sm:$0xff]
  %v236 = vld [vmem:[%s3 + $0x5d0] sm:$0xff]
  %v237 = vld [vmem:[%s3 + $0x5d8] sm:$0xff]
  %v238 = vld [vmem:[%s3 + $0x5e0] sm:$0xff]
  %v239 = vld [vmem:[%s3 + $0x5e8] sm:$0xff]
  %v240 = vld [vmem:[%s3 + $0x5f0] sm:$0xff]
  %v241 = vld [vmem:[%s3 + $0x5f8] sm:$0xff]
  %v242 = vld [vmem:[%s3 + $0x600] sm:$0xff]
  %v243 = vld [vmem:[%s3 + $0x608] sm:$0xff]
  %v244 = vld [vmem:[%s3 + $0x610] sm:$0xff]
  %v245 = vld [vmem:[%s3 + $0x618] sm:$0xff]
  %v246 = vld [vmem:[%s3 + $0x620] sm:$0xff]
  %v247 = vld [vmem:[%s3 + $0x628] sm:$0xff]
  %v248 = vld [vmem:[%s3 + $0x630] sm:$0xff]
  %v249 = vld [vmem:[%s3 + $0x638] sm:$0xff]
  %v250 = vld [vmem:[%s3 + $0x640] sm:$0xff]
  %v251 = vld [vmem:[%s3 + $0x648] sm:$0xff]
  %v252 = vld [vmem:[%s3 + $0x650] sm:$0xff]
  %v253 = vld [vmem:[%s3 + $0x658] sm:$0xff]
  %v254 = vld [vmem:[%s3 + $0x660] sm:$0xff]
  %v255 = vld [vmem:[%s3 + $0x668] sm:$0xff]
  %v256 = vld [vmem:[%s3 + $0x670] sm:$0xff]
  %v257 = vld [vmem:[%s3 + $0x678] sm:$0xff]
  %v258 = vld [vmem:[%s3 + $0x680] sm:$0xff]
  %v259 = vld [vmem:[%s3 + $0x688] sm:$0xff]
  %v260 = vld [vmem:[%s3 + $0x690] sm:$0xff]
  %v261 = vld [vmem:[%s3 + $0x698] sm:$0xff]
  %v262 = vld [vmem:[%s3 + $0x6a0] sm:$0xff]
  %v263 = vld [vmem:[%s3 + $0x6a8] sm:$0xff]
  %v264 = vld [vmem:[%s3 + $0x6b0] sm:$0xff]
  %v265 = vld [vmem:[%s3 + $0x6b8] sm:$0xff]
  %v266 = vld [vmem:[%s3 + $0x6c0] sm:$0xff]
  %v267 = vld [vmem:[%s3 + $0x6c8] sm:$0xff]
  %v268 = vld [vmem:[%s3 + $0x6d0] sm:$0xff]
  %v269 = vld [vmem:[%s3 + $0x6d8] sm:$0xff]
  %v270 = vld [vmem:[%s3 + $0x6e0] sm:$0xff]
  %v271 = vld [vmem:[%s3 + $0x6e8] sm:$0xff]
  %v272 = vld [vmem:[%s3 + $0x6f0] sm:$0xff]
  %v273 = vld [vmem:[%s3 + $0x6f8] sm:$0xff]
  %v274 = vld [vmem:[%s3 + $0x700] sm:$0xff]
  %v275 = vld [vmem:[%s3 + $0x708] sm:$0xff]
  %v276 = vld [vmem:[%s3 + $0x710] sm:$0xff]
  %v277 = vld [vmem:[%s3 + $0x718] sm:$0xff]
  %v278 = vld [vmem:[%s3 + $0x720] sm:$0xff]
  %v279 = vld [vmem:[%s3 + $0x728] sm:$0xff]
  %v280 = vld [vmem:[%s3 + $0x730] sm:$0xff]
  %v281 = vld [vmem:[%s3 + $0x738] sm:$0xff]
  %v282 = vld [vmem:[%s3 + $0x740] sm:$0xff]
  %v283 = vld [vmem:[%s3 + $0x748] sm:$0xff]
  %v284 = vld [vmem:[%s3 + $0x750] sm:$0xff]
  %v285 = vld [vmem:[%s3 + $0x758] sm:$0xff]
  %v286 = vld [vmem:[%s3 + $0x760] sm:$0xff]
  %v287 = vld [vmem:[%s3 + $0x768] sm:$0xff]
  %v288 = vld [vmem:[%s3 + $0x770] sm:$0xff]
  %v289 = vld [vmem:[%s3 + $0x778] sm:$0xff]
  %v290 = vld [vmem:[%s3 + $0x780] sm:$0xff]
  %v291 = vld [vmem:[%s3 + $0x788] sm:$0xff]
  %v292 = vld [vmem:[%s3 + $0x790] sm:$0xff]
  %v293 = vld [vmem:[%s3 + $0x798] sm:$0xff]
  %v294 = vld [vmem:[%s3 + $0x7a0] sm:$0xff]
  %v295 = vld [vmem:[%s3 + $0x7a8] sm:$0xff]
  %v296 = vld [vmem:[%s3 + $0x7b0] sm:$0xff]
  %v297 = vld [vmem:[%s3 + $0x7b8] sm:$0xff]
  %v298 = vld [vmem:[%s3 + $0x7c0] sm:$0xff]
  %v299 = vld [vmem:[%s3 + $0x7c8] sm:$0xff]
  %v300 = vld [vmem:[%s3 + $0x7d0] sm:$0xff]
  %v301 = vld [vmem:[%s3 + $0x7d8] sm:$0xff]
  %v302 = vld [vmem:[%s3 + $0x7e0] sm:$0xff]
  %v303 = vld [vmem:[%s3 + $0x7e8] sm:$0xff]
  %v304 = vld [vmem:[%s3 + $0x7f0] sm:$0xff]
  %v305 = vld [vmem:[%s3 + $0x7f8] sm:$0xff]
  %v306 = vld [vmem:[%s4] sm:$0x3]
  %v308 = vlaneseq
  %v309 = vshrl.u32 %v308, 7
  %v310 = vsub.s32 0, %v309
  %v311 = vrot.slane %v306, %v310
  %v312 = vlaneseq
  %v313 = vshrl.u32 %v312, 7
  %v314 = vsub.s32 1, %v313
  %v315 = vrot.slane %v306, %v314
  %v320 = vcombine.high %v48, %v48
  %v322 = vunpack.c.l.s4 1983009808
  %v323 = vunpack.c.0.s8 %v322
  %v324 = vlaneseq
  %v325 = vshrl.u32 %v324, 7
  %v326 = vsub.s32 %v323, %v325
  %v327 = vrot.slane %v48, %v326
  %v329 = vunpack.c.l.s4 1983009808
  %v330 = vunpack.c.0.s8 %v329
  %v331 = vlaneseq
  %v332 = vshrl.u32 %v331, 7
  %v333 = vsub.s32 %v330, %v332
  %v334 = vrot.slane %v320, %v333
  %v335 = vcombine.high %v327, %v327
  %v336 = vcombine.high %v334, %v334
  %v337 = vcombine.high %v49, %v49
  %v339 = vunpack.c.l.s4 1983009808
  %v340 = vunpack.c.0.s8 %v339
  %v341 = vlaneseq
  %v342 = vshrl.u32 %v341, 7
  %v343 = vsub.s32 %v340, %v342
  %v344 = vrot.slane %v49, %v343
  %v346 = vunpack.c.l.s4 1983009808
  %v347 = vunpack.c.0.s8 %v346
  %v348 = vlaneseq
  %v349 = vshrl.u32 %v348, 7
  %v350 = vsub.s32 %v347, %v349
  %v351 = vrot.slane %v337, %v350
  %v352 = vcombine.high %v344, %v344
  %v353 = vcombine.high %v351, %v351
  %362 = vmatprep.subr.mxu0 %v51
  %363 = vmatpush1.msra.mxu0 %v50
  %364 = vmatprep.subr.mxu0 %v53
  %365 = vmatpush1.msra.mxu0 %v52
  %366 = vmatprep.subr.mxu0 %v55
  %367 = vmatpush1.msra.mxu0 %v54
  %368 = vmatprep.subr.mxu0 %v57
  %369 = vmatpush1.msra.mxu0 %v56
  %370 = vmatprep.subr.mxu0 %v59
  %371 = vmatpush1.msra.mxu0 %v58
  %372 = vmatprep.subr.mxu0 %v61
  %373 = vmatpush1.msra.mxu0 %v60
  %374 = vmatprep.subr.mxu0 %v63
  %375 = vmatpush1.msra.mxu0 %v62
  %376 = vmatprep.subr.mxu0 %v65
  %377 = vmatpush1.msra.mxu0 %v64
  %378 = vmatprep.subr.mxu0 %v67
  %379 = vmatpush1.msra.mxu0 %v66
  %380 = vmatprep.subr.mxu0 %v69
  %381 = vmatpush1.msra.mxu0 %v68
  %382 = vmatprep.subr.mxu0 %v71
  %383 = vmatpush1.msra.mxu0 %v70
  %384 = vmatprep.subr.mxu0 %v73
  %385 = vmatpush1.msra.mxu0 %v72
  %386 = vmatprep.subr.mxu0 %v75
  %387 = vmatpush1.msra.mxu0 %v74
  %388 = vmatprep.subr.mxu0 %v77
  %389 = vmatpush1.msra.mxu0 %v76
  %390 = vmatprep.subr.mxu0 %v79
  %391 = vmatpush1.msra.mxu0 %v78
  %392 = vmatprep.subr.mxu0 %v81
  %393 = vmatpush1.msra.mxu0 %v80
  %394 = vmatprep.subr.mxu0 %v83
  %395 = vmatpush1.msra.mxu0 %v82
  %396 = vmatprep.subr.mxu0 %v85
  %397 = vmatpush1.msra.mxu0 %v84
  %398 = vmatprep.subr.mxu0 %v87
  %399 = vmatpush1.msra.mxu0 %v86
  %400 = vmatprep.subr.mxu0 %v89
  %401 = vmatpush1.msra.mxu0 %v88
  %402 = vmatprep.subr.mxu0 %v91
  %403 = vmatpush1.msra.mxu0 %v90
  %404 = vmatprep.subr.mxu0 %v93
  %405 = vmatpush1.msra.mxu0 %v92
  %406 = vmatprep.subr.mxu0 %v95
  %407 = vmatpush1.msra.mxu0 %v94
  %408 = vmatprep.subr.mxu0 %v97
  %409 = vmatpush1.msra.mxu0 %v96
  %410 = vmatprep.subr.mxu0 %v99
  %411 = vmatpush1.msra.mxu0 %v98
  %412 = vmatprep.subr.mxu0 %v101
  %413 = vmatpush1.msra.mxu0 %v100
  %414 = vmatprep.subr.mxu0 %v103
  %415 = vmatpush1.msra.mxu0 %v102
  %416 = vmatprep.subr.mxu0 %v105
  %417 = vmatpush1.msra.mxu0 %v104
  %418 = vmatprep.subr.mxu0 %v107
  %419 = vmatpush1.msra.mxu0 %v106
  %420 = vmatprep.subr.mxu0 %v109
  %421 = vmatpush1.msra.mxu0 %v108
  %422 = vmatprep.subr.mxu0 %v111
  %423 = vmatpush1.msra.mxu0 %v110
  %424 = vmatprep.subr.mxu0 %v113
  %425 = vmatpush1.msra.mxu0 %v112
  %426 = vmatprep.mubr.f32.mxu0 %v335
  %427 = vmatmul.mubr.f32.gmra.mrb[0].mxu0 %v327
  %v428 = vpop.f32.mrb[0].mxu0
  %v429 = vadd.f32 %v311, %v428
  %v430 = vpop.f32.mrb[0].mxu0
  %v431 = vadd.f32 %v315, %v430
  %432 = vdwg.mxu0
  %433 = vmatprep.subr.mxu0 %v115
  %434 = vmatpush1.msra.mxu0 %v114
  %435 = vmatprep.subr.mxu0 %v117
  %436 = vmatpush1.msra.mxu0 %v116
  %437 = vmatprep.subr.mxu0 %v119
  %438 = vmatpush1.msra.mxu0 %v118
  %439 = vmatprep.subr.mxu0 %v121
  %440 = vmatpush1.msra.mxu0 %v120
  %441 = vmatprep.subr.mxu0 %v123
  %442 = vmatpush1.msra.mxu0 %v122
  %443 = vmatprep.subr.mxu0 %v125
  %444 = vmatpush1.msra.mxu0 %v124
  %445 = vmatprep.subr.mxu0 %v127
  %446 = vmatpush1.msra.mxu0 %v126
  %447 = vmatprep.subr.mxu0 %v129
  %448 = vmatpush1.msra.mxu0 %v128
  %449 = vmatprep.subr.mxu0 %v131
  %450 = vmatpush1.msra.mxu0 %v130
  %451 = vmatprep.subr.mxu0 %v133
  %452 = vmatpush1.msra.mxu0 %v132
  %453 = vmatprep.subr.mxu0 %v135
  %454 = vmatpush1.msra.mxu0 %v134
  %455 = vmatprep.subr.mxu0 %v137
  %456 = vmatpush1.msra.mxu0 %v136
  %457 = vmatprep.subr.mxu0 %v139
  %458 = vmatpush1.msra.mxu0 %v138
  %459 = vmatprep.subr.mxu0 %v141
  %460 = vmatpush1.msra.mxu0 %v140
  %461 = vmatprep.subr.mxu0 %v143
  %462 = vmatpush1.msra.mxu0 %v142
  %463 = vmatprep.subr.mxu0 %v145
  %464 = vmatpush1.msra.mxu0 %v144
  %465 = vmatprep.subr.mxu0 %v147
  %466 = vmatpush1.msra.mxu0 %v146
  %467 = vmatprep.subr.mxu0 %v149
  %468 = vmatpush1.msra.mxu0 %v148
  %469 = vmatprep.subr.mxu0 %v151
  %470 = vmatpush1.msra.mxu0 %v150
  %471 = vmatprep.subr.mxu0 %v153
  %472 = vmatpush1.msra.mxu0 %v152
  %473 = vmatprep.subr.mxu0 %v155
  %474 = vmatpush1.msra.mxu0 %v154
  %475 = vmatprep.subr.mxu0 %v157
  %476 = vmatpush1.msra.mxu0 %v156
  %477 = vmatprep.subr.mxu0 %v159
  %478 = vmatpush1.msra.mxu0 %v158
  %479 = vmatprep.subr.mxu0 %v161
  %480 = vmatpush1.msra.mxu0 %v160
  %481 = vmatprep.subr.mxu0 %v163
  %482 = vmatpush1.msra.mxu0 %v162
  %483 = vmatprep.subr.mxu0 %v165
  %484 = vmatpush1.msra.mxu0 %v164
  %485 = vmatprep.subr.mxu0 %v167
  %486 = vmatpush1.msra.mxu0 %v166
  %487 = vmatprep.subr.mxu0 %v169
  %488 = vmatpush1.msra.mxu0 %v168
  %489 = vmatprep.subr.mxu0 %v171
  %490 = vmatpush1.msra.mxu0 %v170
  %491 = vmatprep.subr.mxu0 %v173
  %492 = vmatpush1.msra.mxu0 %v172
  %493 = vmatprep.subr.mxu0 %v175
  %494 = vmatpush1.msra.mxu0 %v174
  %495 = vmatprep.subr.mxu0 %v177
  %496 = vmatpush1.msra.mxu0 %v176
  %497 = vmatprep.mubr.f32.mxu0 %v336
  %498 = vmatmul.mubr.f32.gmra.mrb[0].mxu0 %v334
  %v499 = vpop.f32.mrb[0].mxu0
  %v500 = vadd.f32 %v429, %v499
  %v501 = vpop.f32.mrb[0].mxu0
  %v502 = vadd.f32 %v431, %v501
  %503 = vdwg.mxu0
  %504 = vmatprep.subr.mxu0 %v179
  %505 = vmatpush1.msra.mxu0 %v178
  %506 = vmatprep.subr.mxu0 %v181
  %507 = vmatpush1.msra.mxu0 %v180
  %508 = vmatprep.subr.mxu0 %v183
  %509 = vmatpush1.msra.mxu0 %v182
  %510 = vmatprep.subr.mxu0 %v185
  %511 = vmatpush1.msra.mxu0 %v184
  %512 = vmatprep.subr.mxu0 %v187
  %513 = vmatpush1.msra.mxu0 %v186
  %514 = vmatprep.subr.mxu0 %v189
  %515 = vmatpush1.msra.mxu0 %v188
  %516 = vmatprep.subr.mxu0 %v191
  %517 = vmatpush1.msra.mxu0 %v190
  %518 = vmatprep.subr.mxu0 %v193
  %519 = vmatpush1.msra.mxu0 %v192
  %520 = vmatprep.subr.mxu0 %v195
  %521 = vmatpush1.msra.mxu0 %v194
  %522 = vmatprep.subr.mxu0 %v197
  %523 = vmatpush1.msra.mxu0 %v196
  %524 = vmatprep.subr.mxu0 %v199
  %525 = vmatpush1.msra.mxu0 %v198
  %526 = vmatprep.subr.mxu0 %v201
  %527 = vmatpush1.msra.mxu0 %v200
  %528 = vmatprep.subr.mxu0 %v203
  %529 = vmatpush1.msra.mxu0 %v202
  %530 = vmatprep.subr.mxu0 %v205
  %531 = vmatpush1.msra.mxu0 %v204
  %532 = vmatprep.subr.mxu0 %v207
  %533 = vmatpush1.msra.mxu0 %v206
  %534 = vmatprep.subr.mxu0 %v209
  %535 = vmatpush1.msra.mxu0 %v208
  %536 = vmatprep.subr.mxu0 %v211
  %537 = vmatpush1.msra.mxu0 %v210
  %538 = vmatprep.subr.mxu0 %v213
  %539 = vmatpush1.msra.mxu0 %v212
  %540 = vmatprep.subr.mxu0 %v215
  %541 = vmatpush1.msra.mxu0 %v214
  %542 = vmatprep.subr.mxu0 %v217
  %543 = vmatpush1.msra.mxu0 %v216
  %544 = vmatprep.subr.mxu0 %v219
  %545 = vmatpush1.msra.mxu0 %v218
  %546 = vmatprep.subr.mxu0 %v221
  %547 = vmatpush1.msra.mxu0 %v220
  %548 = vmatprep.subr.mxu0 %v223
  %549 = vmatpush1.msra.mxu0 %v222
  %550 = vmatprep.subr.mxu0 %v225
  %551 = vmatpush1.msra.mxu0 %v224
  %552 = vmatprep.subr.mxu0 %v227
  %553 = vmatpush1.msra.mxu0 %v226
  %554 = vmatprep.subr.mxu0 %v229
  %555 = vmatpush1.msra.mxu0 %v228
  %556 = vmatprep.subr.mxu0 %v231
  %557 = vmatpush1.msra.mxu0 %v230
  %558 = vmatprep.subr.mxu0 %v233
  %559 = vmatpush1.msra.mxu0 %v232
  %560 = vmatprep.subr.mxu0 %v235
  %561 = vmatpush1.msra.mxu0 %v234
  %562 = vmatprep.subr.mxu0 %v237
  %563 = vmatpush1.msra.mxu0 %v236
  %564 = vmatprep.subr.mxu0 %v239
  %565 = vmatpush1.msra.mxu0 %v238
  %566 = vmatprep.subr.mxu0 %v241
  %567 = vmatpush1.msra.mxu0 %v240
  %568 = vmatprep.mubr.f32.mxu0 %v352
  %569 = vmatmul.mubr.f32.gmra.mrb[0].mxu0 %v344
  %v570 = vpop.f32.mrb[0].mxu0
  %v571 = vadd.f32 %v500, %v570
  %v572 = vpop.f32.mrb[0].mxu0
  %v573 = vadd.f32 %v502, %v572
  %574 = vdwg.mxu0
  %575 = vmatprep.subr.mxu0 %v243
  %576 = vmatpush1.msra.mxu0 %v242
  %577 = vmatprep.subr.mxu0 %v245
  %578 = vmatpush1.msra.mxu0 %v244
  %579 = vmatprep.subr.mxu0 %v247
  %580 = vmatpush1.msra.mxu0 %v246
  %581 = vmatprep.subr.mxu0 %v249
  %582 = vmatpush1.msra.mxu0 %v248
  %583 = vmatprep.subr.mxu0 %v251
  %584 = vmatpush1.msra.mxu0 %v250
  %585 = vmatprep.subr.mxu0 %v253
  %586 = vmatpush1.msra.mxu0 %v252
  %587 = vmatprep.subr.mxu0 %v255
  %588 = vmatpush1.msra.mxu0 %v254
  %589 = vmatprep.subr.mxu0 %v257
  %590 = vmatpush1.msra.mxu0 %v256
  %591 = vmatprep.subr.mxu0 %v259
  %592 = vmatpush1.msra.mxu0 %v258
  %593 = vmatprep.subr.mxu0 %v261
  %594 = vmatpush1.msra.mxu0 %v260
  %595 = vmatprep.subr.mxu0 %v263
  %596 = vmatpush1.msra.mxu0 %v262
  %597 = vmatprep.subr.mxu0 %v265
  %598 = vmatpush1.msra.mxu0 %v264
  %599 = vmatprep.subr.mxu0 %v267
  %600 = vmatpush1.msra.mxu0 %v266
  %601 = vmatprep.subr.mxu0 %v269
  %602 = vmatpush1.msra.mxu0 %v268
  %603 = vmatprep.subr.mxu0 %v271
  %604 = vmatpush1.msra.mxu0 %v270
  %605 = vmatprep.subr.mxu0 %v273
  %606 = vmatpush1.msra.mxu0 %v272
  %607 = vmatprep.subr.mxu0 %v275
  %608 = vmatpush1.msra.mxu0 %v274
  %609 = vmatprep.subr.mxu0 %v277
  %610 = vmatpush1.msra.mxu0 %v276
  %611 = vmatprep.subr.mxu0 %v279
  %612 = vmatpush1.msra.mxu0 %v278
  %613 = vmatprep.subr.mxu0 %v281
  %614 = vmatpush1.msra.mxu0 %v280
  %615 = vmatprep.subr.mxu0 %v283
  %616 = vmatpush1.msra.mxu0 %v282
  %617 = vmatprep.subr.mxu0 %v285
  %618 = vmatpush1.msra.mxu0 %v284
  %619 = vmatprep.subr.mxu0 %v287
  %620 = vmatpush1.msra.mxu0 %v286
  %621 = vmatprep.subr.mxu0 %v289
  %622 = vmatpush1.msra.mxu0 %v288
  %623 = vmatprep.subr.mxu0 %v291
  %624 = vmatpush1.msra.mxu0 %v290
  %625 = vmatprep.subr.mxu0 %v293
  %626 = vmatpush1.msra.mxu0 %v292
  %627 = vmatprep.subr.mxu0 %v295
  %628 = vmatpush1.msra.mxu0 %v294
  %629 = vmatprep.subr.mxu0 %v297
  %630 = vmatpush1.msra.mxu0 %v296
  %631 = vmatprep.subr.mxu0 %v299
  %632 = vmatpush1.msra.mxu0 %v298
  %633 = vmatprep.subr.mxu0 %v301
  %634 = vmatpush1.msra.mxu0 %v300
  %635 = vmatprep.subr.mxu0 %v303
  %636 = vmatpush1.msra.mxu0 %v302
  %637 = vmatprep.subr.mxu0 %v305
  %638 = vmatpush1.msra.mxu0 %v304
  %639 = vmatprep.mubr.f32.mxu0 %v353
  %640 = vmatmul.mubr.f32.gmra.mrb[0].mxu0 %v351
  %v641 = vpop.f32.mrb[0].mxu0
  %v642 = vadd.f32 %v571, %v641
  %v643 = vpop.f32.mrb[0].mxu0
  %v644 = vadd.f32 %v573, %v643
  %645 = vdwg.mxu0
  %vm646 = vcmp.gt.f32.partialorder %v642, 0.0
  %vm647 = vcmp.gt.f32.partialorder %v644, 0.0
  %v648 = vmin.f32 %v642, 0.0
  %v649 = vmin.f32 %v644, 0.0
  %v650 = vmul.f32 %v648, 1.442695
  %v651 = vpow.pop %v650
  %v652 = vmul.f32 %v649, 1.442695
  %v653 = vpow.pop %v652
  %v654 = vsub.f32 %v651, 1.0
  %v655 = vsub.f32 %v653, 1.0
  %v656 = vsel %vm646, %v642, %v654
  %v657 = vsel %vm647, %v644, %v655
  %v658 = vld [vmem:[%s5] sm:$0xff]
  %v659 = vld [vmem:[%s5 + $0x8] sm:$0xff]
  %v660 = vld [vmem:[%s5 + $0x10] sm:$0xff]
  %v661 = vld [vmem:[%s5 + $0x18] sm:$0xff]
  %v662 = vld [vmem:[%s5 + $0x20] sm:$0xff]
  %v663 = vld [vmem:[%s5 + $0x28] sm:$0xff]
  %v664 = vld [vmem:[%s5 + $0x30] sm:$0xff]
  %v665 = vld [vmem:[%s5 + $0x38] sm:$0xff]
  %v666 = vld [vmem:[%s5 + $0x40] sm:$0xff]
  %v667 = vld [vmem:[%s5 + $0x48] sm:$0xff]
  %v668 = vld [vmem:[%s5 + $0x50] sm:$0xff]
  %v669 = vld [vmem:[%s5 + $0x58] sm:$0xff]
  %v670 = vld [vmem:[%s5 + $0x60] sm:$0xff]
  %v671 = vld [vmem:[%s5 + $0x68] sm:$0xff]
  %v672 = vld [vmem:[%s5 + $0x70] sm:$0xff]
  %v673 = vld [vmem:[%s5 + $0x78] sm:$0xff]
  %v674 = vld [vmem:[%s5 + $0x80] sm:$0xff]
  %v675 = vld [vmem:[%s5 + $0x88] sm:$0xff]
  %v676 = vld [vmem:[%s5 + $0x90] sm:$0xff]
  %v677 = vld [vmem:[%s5 + $0x98] sm:$0xff]
  %v678 = vld [vmem:[%s5 + $0xa0] sm:$0xff]
  %v679 = vld [vmem:[%s5 + $0xa8] sm:$0xff]
  %v680 = vld [vmem:[%s5 + $0xb0] sm:$0xff]
  %v681 = vld [vmem:[%s5 + $0xb8] sm:$0xff]
  %v682 = vld [vmem:[%s5 + $0xc0] sm:$0xff]
  %v683 = vld [vmem:[%s5 + $0xc8] sm:$0xff]
  %v684 = vld [vmem:[%s5 + $0xd0] sm:$0xff]
  %v685 = vld [vmem:[%s5 + $0xd8] sm:$0xff]
  %v686 = vld [vmem:[%s5 + $0xe0] sm:$0xff]
  %v687 = vld [vmem:[%s5 + $0xe8] sm:$0xff]
  %v688 = vld [vmem:[%s5 + $0xf0] sm:$0xff]
  %v689 = vld [vmem:[%s5 + $0xf8] sm:$0xff]
  %v690 = vld [vmem:[%s5 + $0x100] sm:$0xff]
  %v691 = vld [vmem:[%s5 + $0x108] sm:$0xff]
  %v692 = vld [vmem:[%s5 + $0x110] sm:$0xff]
  %v693 = vld [vmem:[%s5 + $0x118] sm:$0xff]
  %v694 = vld [vmem:[%s5 + $0x120] sm:$0xff]
  %v695 = vld [vmem:[%s5 + $0x128] sm:$0xff]
  %v696 = vld [vmem:[%s5 + $0x130] sm:$0xff]
  %v697 = vld [vmem:[%s5 + $0x138] sm:$0xff]
  %v698 = vld [vmem:[%s5 + $0x140] sm:$0xff]
  %v699 = vld [vmem:[%s5 + $0x148] sm:$0xff]
  %v700 = vld [vmem:[%s5 + $0x150] sm:$0xff]
  %v701 = vld [vmem:[%s5 + $0x158] sm:$0xff]
  %v702 = vld [vmem:[%s5 + $0x160] sm:$0xff]
  %v703 = vld [vmem:[%s5 + $0x168] sm:$0xff]
  %v704 = vld [vmem:[%s5 + $0x170] sm:$0xff]
  %v705 = vld [vmem:[%s5 + $0x178] sm:$0xff]
  %v706 = vld [vmem:[%s5 + $0x180] sm:$0xff]
  %v707 = vld [vmem:[%s5 + $0x188] sm:$0xff]
  %v708 = vld [vmem:[%s5 + $0x190] sm:$0xff]
  %v709 = vld [vmem:[%s5 + $0x198] sm:$0xff]
  %v710 = vld [vmem:[%s5 + $0x1a0] sm:$0xff]
  %v711 = vld [vmem:[%s5 + $0x1a8] sm:$0xff]
  %v712 = vld [vmem:[%s5 + $0x1b0] sm:$0xff]
  %v713 = vld [vmem:[%s5 + $0x1b8] sm:$0xff]
  %v714 = vld [vmem:[%s5 + $0x1c0] sm:$0xff]
  %v715 = vld [vmem:[%s5 + $0x1c8] sm:$0xff]
  %v716 = vld [vmem:[%s5 + $0x1d0] sm:$0xff]
  %v717 = vld [vmem:[%s5 + $0x1d8] sm:$0xff]
  %v718 = vld [vmem:[%s5 + $0x1e0] sm:$0xff]
  %v719 = vld [vmem:[%s5 + $0x1e8] sm:$0xff]
  %v720 = vld [vmem:[%s5 + $0x1f0] sm:$0xff]
  %v721 = vld [vmem:[%s5 + $0x1f8] sm:$0xff]
  %v722 = vld [vmem:[%s6] sm:$0x3]
  %v724 = vlaneseq
  %v725 = vshrl.u32 %v724, 7
  %v726 = vsub.s32 0, %v725
  %v727 = vrot.slane %v722, %v726
  %v728 = vlaneseq
  %v729 = vshrl.u32 %v728, 7
  %v730 = vsub.s32 1, %v729
  %v731 = vrot.slane %v722, %v730
  %734 = vmatprep.subr.mxu0 %v659
  %735 = vmatpush1.msra.mxu0 %v658
  %736 = vmatprep.subr.mxu0 %v661
  %737 = vmatpush1.msra.mxu0 %v660
  %738 = vmatprep.subr.mxu0 %v663
  %739 = vmatpush1.msra.mxu0 %v662
  %740 = vmatprep.subr.mxu0 %v665
  %741 = vmatpush1.msra.mxu0 %v664
  %742 = vmatprep.subr.mxu0 %v667
  %743 = vmatpush1.msra.mxu0 %v666
  %744 = vmatprep.subr.mxu0 %v669
  %745 = vmatpush1.msra.mxu0 %v668
  %746 = vmatprep.subr.mxu0 %v671
  %747 = vmatpush1.msra.mxu0 %v670
  %748 = vmatprep.subr.mxu0 %v673
  %749 = vmatpush1.msra.mxu0 %v672
  %750 = vmatprep.subr.mxu0 %v675
  %751 = vmatpush1.msra.mxu0 %v674
  %752 = vmatprep.subr.mxu0 %v677
  %753 = vmatpush1.msra.mxu0 %v676
  %754 = vmatprep.subr.mxu0 %v679
  %755 = vmatpush1.msra.mxu0 %v678
  %756 = vmatprep.subr.mxu0 %v681
  %757 = vmatpush1.msra.mxu0 %v680
  %758 = vmatprep.subr.mxu0 %v683
  %759 = vmatpush1.msra.mxu0 %v682
  %760 = vmatprep.subr.mxu0 %v685
  %761 = vmatpush1.msra.mxu0 %v684
  %762 = vmatprep.subr.mxu0 %v687
  %763 = vmatpush1.msra.mxu0 %v686
  %764 = vmatprep.subr.mxu0 %v689
  %765 = vmatpush1.msra.mxu0 %v688
  %766 = vmatprep.subr.mxu0 %v691
  %767 = vmatpush1.msra.mxu0 %v690
  %768 = vmatprep.subr.mxu0 %v693
  %769 = vmatpush1.msra.mxu0 %v692
  %770 = vmatprep.subr.mxu0 %v695
  %771 = vmatpush1.msra.mxu0 %v694
  %772 = vmatprep.subr.mxu0 %v697
  %773 = vmatpush1.msra.mxu0 %v696
  %774 = vmatprep.subr.mxu0 %v699
  %775 = vmatpush1.msra.mxu0 %v698
  %776 = vmatprep.subr.mxu0 %v701
  %777 = vmatpush1.msra.mxu0 %v700
  %778 = vmatprep.subr.mxu0 %v703
  %779 = vmatpush1.msra.mxu0 %v702
  %780 = vmatprep.subr.mxu0 %v705
  %781 = vmatpush1.msra.mxu0 %v704
  %782 = vmatprep.subr.mxu0 %v707
  %783 = vmatpush1.msra.mxu0 %v706
  %784 = vmatprep.subr.mxu0 %v709
  %785 = vmatpush1.msra.mxu0 %v708
  %786 = vmatprep.subr.mxu0 %v711
  %787 = vmatpush1.msra.mxu0 %v710
  %788 = vmatprep.subr.mxu0 %v713
  %789 = vmatpush1.msra.mxu0 %v712
  %790 = vmatprep.subr.mxu0 %v715
  %791 = vmatpush1.msra.mxu0 %v714
  %792 = vmatprep.subr.mxu0 %v717
  %793 = vmatpush1.msra.mxu0 %v716
  %794 = vmatprep.subr.mxu0 %v719
  %795 = vmatpush1.msra.mxu0 %v718
  %796 = vmatprep.subr.mxu0 %v721
  %797 = vmatpush1.msra.mxu0 %v720
  %798 = vmatprep.mubr.f32.mxu0 %v657
  %799 = vmatmul.mubr.f32.gmra.mrb[0].mxu0 %v656
  %v800 = vpop.f32.mrb[0].mxu0
  %v801 = vadd.f32 %v727, %v800
  %v802 = vpop.f32.mrb[0].mxu0
  %v803 = vadd.f32 %v731, %v802
  %804 = vdwg.mxu0
  %vm805 = vcmp.gt.f32.partialorder %v801, 0.0
  %vm806 = vcmp.gt.f32.partialorder %v803, 0.0
  %v807 = vmin.f32 %v801, 0.0
  %v808 = vmin.f32 %v803, 0.0
  %v809 = vmul.f32 %v807, 1.442695
  %v810 = vpow.pop %v809
  %v811 = vmul.f32 %v808, 1.442695
  %v812 = vpow.pop %v811
  %v813 = vsub.f32 %v810, 1.0
  %v814 = vsub.f32 %v812, 1.0
  %v815 = vsel %vm805, %v801, %v813
  %v816 = vsel %vm806, %v803, %v814
  %v817 = vld [vmem:[%s7] sm:$0xff]
  %v818 = vld [vmem:[%s7 + $0x8] sm:$0xff]
  %v819 = vld [vmem:[%s7 + $0x10] sm:$0xff]
  %v820 = vld [vmem:[%s7 + $0x18] sm:$0xff]
  %v821 = vld [vmem:[%s7 + $0x20] sm:$0xff]
  %v822 = vld [vmem:[%s7 + $0x28] sm:$0xff]
  %v823 = vld [vmem:[%s7 + $0x30] sm:$0xff]
  %v824 = vld [vmem:[%s7 + $0x38] sm:$0xff]
  %v825 = vld [vmem:[%s7 + $0x40] sm:$0xff]
  %v826 = vld [vmem:[%s7 + $0x48] sm:$0xff]
  %v827 = vld [vmem:[%s7 + $0x50] sm:$0xff]
  %v828 = vld [vmem:[%s7 + $0x58] sm:$0xff]
  %v829 = vld [vmem:[%s7 + $0x60] sm:$0xff]
  %v830 = vld [vmem:[%s7 + $0x68] sm:$0xff]
  %v831 = vld [vmem:[%s7 + $0x70] sm:$0xff]
  %v832 = vld [vmem:[%s7 + $0x78] sm:$0xff]
  %v833 = vld [vmem:[%s7 + $0x80] sm:$0xff]
  %v834 = vld [vmem:[%s7 + $0x88] sm:$0xff]
  %v835 = vld [vmem:[%s7 + $0x90] sm:$0xff]
  %v836 = vld [vmem:[%s7 + $0x98] sm:$0xff]
  %v837 = vld [vmem:[%s7 + $0xa0] sm:$0xff]
  %v838 = vld [vmem:[%s7 + $0xa8] sm:$0xff]
  %v839 = vld [vmem:[%s7 + $0xb0] sm:$0xff]
  %v840 = vld [vmem:[%s7 + $0xb8] sm:$0xff]
  %v841 = vld [vmem:[%s7 + $0xc0] sm:$0xff]
  %v842 = vld [vmem:[%s7 + $0xc8] sm:$0xff]
  %v843 = vld [vmem:[%s7 + $0xd0] sm:$0xff]
  %v844 = vld [vmem:[%s7 + $0xd8] sm:$0xff]
  %v845 = vld [vmem:[%s7 + $0xe0] sm:$0xff]
  %v846 = vld [vmem:[%s7 + $0xe8] sm:$0xff]
  %v847 = vld [vmem:[%s7 + $0xf0] sm:$0xff]
  %v848 = vld [vmem:[%s7 + $0xf8] sm:$0xff]
  %v849 = vld [vmem:[%s8] sm:$0x1]
  %v851 = vlaneseq
  %v852 = vshrl.u32 %v851, 7
  %v853 = vsub.s32 0, %v852
  %v854 = vrot.slane %v849, %v853
  %856 = vmatprep.subr.mxu0 0.0
  %857 = vmatpush1.msra.mxu0 %v817
  %858 = vmatprep.subr.mxu0 0.0
  %859 = vmatpush1.msra.mxu0 %v818
  %860 = vmatprep.subr.mxu0 0.0
  %861 = vmatpush1.msra.mxu0 %v819
  %862 = vmatprep.subr.mxu0 0.0
  %863 = vmatpush1.msra.mxu0 %v820
  %864 = vmatprep.subr.mxu0 0.0
  %865 = vmatpush1.msra.mxu0 %v821
  %866 = vmatprep.subr.mxu0 0.0
  %867 = vmatpush1.msra.mxu0 %v822
  %868 = vmatprep.subr.mxu0 0.0
  %869 = vmatpush1.msra.mxu0 %v823
  %870 = vmatprep.subr.mxu0 0.0
  %871 = vmatpush1.msra.mxu0 %v824
  %872 = vmatprep.subr.mxu0 0.0
  %873 = vmatpush1.msra.mxu0 %v825
  %874 = vmatprep.subr.mxu0 0.0
  %875 = vmatpush1.msra.mxu0 %v826
  %876 = vmatprep.subr.mxu0 0.0
  %877 = vmatpush1.msra.mxu0 %v827
  %878 = vmatprep.subr.mxu0 0.0
  %879 = vmatpush1.msra.mxu0 %v828
  %880 = vmatprep.subr.mxu0 0.0
  %881 = vmatpush1.msra.mxu0 %v829
  %882 = vmatprep.subr.mxu0 0.0
  %883 = vmatpush1.msra.mxu0 %v830
  %884 = vmatprep.subr.mxu0 0.0
  %885 = vmatpush1.msra.mxu0 %v831
  %886 = vmatprep.subr.mxu0 0.0
  %887 = vmatpush1.msra.mxu0 %v832
  %888 = vmatprep.subr.mxu0 0.0
  %889 = vmatpush1.msra.mxu0 %v833
  %890 = vmatprep.subr.mxu0 0.0
  %891 = vmatpush1.msra.mxu0 %v834
  %892 = vmatprep.subr.mxu0 0.0
  %893 = vmatpush1.msra.mxu0 %v835
  %894 = vmatprep.subr.mxu0 0.0
  %895 = vmatpush1.msra.mxu0 %v836
  %896 = vmatprep.subr.mxu0 0.0
  %897 = vmatpush1.msra.mxu0 %v837
  %898 = vmatprep.subr.mxu0 0.0
  %899 = vmatpush1.msra.mxu0 %v838
  %900 = vmatprep.subr.mxu0 0.0
  %901 = vmatpush1.msra.mxu0 %v839
  %902 = vmatprep.subr.mxu0 0.0
  %903 = vmatpush1.msra.mxu0 %v840
  %904 = vmatprep.subr.mxu0 0.0
  %905 = vmatpush1.msra.mxu0 %v841
  %906 = vmatprep.subr.mxu0 0.0
  %907 = vmatpush1.msra.mxu0 %v842
  %908 = vmatprep.subr.mxu0 0.0
  %909 = vmatpush1.msra.mxu0 %v843
  %910 = vmatprep.subr.mxu0 0.0
  %911 = vmatpush1.msra.mxu0 %v844
  %912 = vmatprep.subr.mxu0 0.0
  %913 = vmatpush1.msra.mxu0 %v845
  %914 = vmatprep.subr.mxu0 0.0
  %915 = vmatpush1.msra.mxu0 %v846
  %916 = vmatprep.subr.mxu0 0.0
  %917 = vmatpush1.msra.mxu0 %v847
  %918 = vmatprep.subr.mxu0 0.0
  %919 = vmatpush1.msra.mxu0 %v848
  %920 = vmatprep.mubr.f32.mxu0 %v816
  %921 = vmatmul.mubr.f32.gmra.mrb[0].mxu0 %v815
  %v922 = vpop.f32.mrb[0].mxu0
  %v923 = vadd.f32 %v854, %v922
  %v924 = vpop.f32.mrb[0].mxu0
  %925 = vdwg.mxu0
  %vm926 = vcmask 25600
  %v927 = vsel %vm926, %v923, -inf
  %928 = vmax.xlane.f32.xlu0 %v927
  %v929 = vpop.xlane.xlu0 %928
  %v930 = vsub.f32 %v923, %v929
  %v931 = vmul.f32 %v930, 1.442695
  %v932 = vpow.pop %v931
  %v933 = vsel %vm926, %v932, 0.0
  %934 = vadd.xlane.f32.xlu0 %v933
  %v935 = vpop.xlane.xlu0 %934
  %v936 = vrcp.pop %v935
  %v937 = vmul.f32 %v932, %v936
  %v938 = vld [vmem:[%s9] sm:$0xff]
  %v939 = vld [vmem:[%s9 + $0x8] sm:$0xff]
  %v940 = vld [vmem:[%s9 + $0x10] sm:$0xff]
  %v941 = vld [vmem:[%s9 + $0x18] sm:$0xff]
  %v942 = vld [vmem:[%s9 + $0x20] sm:$0xff]
  %v943 = vld [vmem:[%s9 + $0x28] sm:$0xff]
  %v944 = vld [vmem:[%s9 + $0x30] sm:$0xff]
  %v945 = vld [vmem:[%s9 + $0x38] sm:$0xff]
  %v946 = vld [vmem:[%s9 + $0x40] sm:$0xff]
  %v947 = vld [vmem:[%s9 + $0x48] sm:$0xff]
  %v948 = vld [vmem:[%s9 + $0x50] sm:$0xff]
  %v949 = vld [vmem:[%s9 + $0x58] sm:$0xff]
  %v950 = vld [vmem:[%s9 + $0x60] sm:$0xff]
  %v951 = vld [vmem:[%s9 + $0x68] sm:$0xff]
  %v952 = vld [vmem:[%s9 + $0x70] sm:$0xff]
  %v953 = vld [vmem:[%s9 + $0x78] sm:$0xff]
  %s955 = vtos %v937
  %v956 = vstv %s955
  %v958 = vmul.f32 %v956, %v938
  %v959 = vmul.f32 %v956, %v939
  %v960 = vmul.f32 %v956, %v940
  %v961 = vmul.f32 %v956, %v941
  %962 = vrot.lane.b32.xlu0 %v937, 127
  %v963 = vpop.permute.xlu0 %962
  %s964 = vtos %v963
  %v965 = vstv %s964
  %v967 = vmul.f32 %v965, %v942
  %v968 = vmul.f32 %v965, %v943
  %v969 = vmul.f32 %v965, %v944
  %v970 = vmul.f32 %v965, %v945
  %v971 = vadd.f32 %v958, %v967
  %v972 = vadd.f32 %v959, %v968
  %v973 = vadd.f32 %v960, %v969
  %v974 = vadd.f32 %v961, %v970
  %975 = vrot.lane.b32.xlu0 %v937, 126
  %v976 = vpop.permute.xlu0 %975
  %s977 = vtos %v976
  %v978 = vstv %s977
  %v980 = vmul.f32 %v978, %v946
  %v981 = vmul.f32 %v978, %v947
  %v982 = vmul.f32 %v978, %v948
  %v983 = vmul.f32 %v978, %v949
  %v984 = vadd.f32 %v971, %v980
  %v985 = vadd.f32 %v972, %v981
  %v986 = vadd.f32 %v973, %v982
  %v987 = vadd.f32 %v974, %v983
  %988 = vrot.lane.b32.xlu0 %v937, 125
  %v989 = vpop.permute.xlu0 %988
  %s990 = vtos %v989
  %v991 = vstv %s990
  %v993 = vmul.f32 %v991, %v950
  %v994 = vmul.f32 %v991, %v951
  %v995 = vmul.f32 %v991, %v952
  %v996 = vmul.f32 %v991, %v953
  %v997 = vadd.f32 %v984, %v993
  %v998 = vadd.f32 %v985, %v994
  %v999 = vadd.f32 %v986, %v995
  %v1000 = vadd.f32 %v987, %v996
  %v1001 = vld [vmem:[%s10] sm:$0xff]
  %v1002 = vld [vmem:[%s10 + $0x8] sm:$0xff]
  %v1003 = vld [vmem:[%s10 + $0x10] sm:$0xff]
  %v1004 = vld [vmem:[%s10 + $0x18] sm:$0xff]
  %v1005 = vld [vmem:[%s10 + $0x20] sm:$0xff]
  %v1006 = vld [vmem:[%s10 + $0x28] sm:$0xff]
  %v1007 = vld [vmem:[%s10 + $0x30] sm:$0xff]
  %v1008 = vld [vmem:[%s10 + $0x38] sm:$0xff]
  %v1009 = vld [vmem:[%s10 + $0x40] sm:$0xff]
  %v1010 = vld [vmem:[%s10 + $0x48] sm:$0xff]
  %v1011 = vld [vmem:[%s10 + $0x50] sm:$0xff]
  %v1012 = vld [vmem:[%s10 + $0x58] sm:$0xff]
  %v1013 = vld [vmem:[%s10 + $0x60] sm:$0xff]
  %v1014 = vld [vmem:[%s10 + $0x68] sm:$0xff]
  %v1015 = vld [vmem:[%s10 + $0x70] sm:$0xff]
  %v1016 = vld [vmem:[%s10 + $0x78] sm:$0xff]
  %v1017 = vld [vmem:[%s10 + $0x80] sm:$0xff]
  %v1018 = vld [vmem:[%s10 + $0x88] sm:$0xff]
  %v1019 = vld [vmem:[%s10 + $0x90] sm:$0xff]
  %v1020 = vld [vmem:[%s10 + $0x98] sm:$0xff]
  %v1021 = vld [vmem:[%s10 + $0xa0] sm:$0xff]
  %v1022 = vld [vmem:[%s10 + $0xa8] sm:$0xff]
  %v1023 = vld [vmem:[%s10 + $0xb0] sm:$0xff]
  %v1024 = vld [vmem:[%s10 + $0xb8] sm:$0xff]
  %v1025 = vld [vmem:[%s10 + $0xc0] sm:$0xff]
  %v1026 = vld [vmem:[%s10 + $0xc8] sm:$0xff]
  %v1027 = vld [vmem:[%s10 + $0xd0] sm:$0xff]
  %v1028 = vld [vmem:[%s10 + $0xd8] sm:$0xff]
  %v1029 = vld [vmem:[%s10 + $0xe0] sm:$0xff]
  %v1030 = vld [vmem:[%s10 + $0xe8] sm:$0xff]
  %v1031 = vld [vmem:[%s10 + $0xf0] sm:$0xff]
  %v1032 = vld [vmem:[%s10 + $0xf8] sm:$0xff]
  %v1033 = vld [vmem:[%s10 + $0x100] sm:$0xff]
  %v1034 = vld [vmem:[%s10 + $0x108] sm:$0xff]
  %v1035 = vld [vmem:[%s10 + $0x110] sm:$0xff]
  %v1036 = vld [vmem:[%s10 + $0x118] sm:$0xff]
  %v1037 = vld [vmem:[%s10 + $0x120] sm:$0xff]
  %v1038 = vld [vmem:[%s10 + $0x128] sm:$0xff]
  %v1039 = vld [vmem:[%s10 + $0x130] sm:$0xff]
  %v1040 = vld [vmem:[%s10 + $0x138] sm:$0xff]
  %v1041 = vld [vmem:[%s10 + $0x140] sm:$0xff]
  %v1042 = vld [vmem:[%s10 + $0x148] sm:$0xff]
  %v1043 = vld [vmem:[%s10 + $0x150] sm:$0xff]
  %v1044 = vld [vmem:[%s10 + $0x158] sm:$0xff]
  %v1045 = vld [vmem:[%s10 + $0x160] sm:$0xff]
  %v1046 = vld [vmem:[%s10 + $0x168] sm:$0xff]
  %v1047 = vld [vmem:[%s10 + $0x170] sm:$0xff]
  %v1048 = vld [vmem:[%s10 + $0x178] sm:$0xff]
  %v1049 = vld [vmem:[%s10 + $0x180] sm:$0xff]
  %v1050 = vld [vmem:[%s10 + $0x188] sm:$0xff]
  %v1051 = vld [vmem:[%s10 + $0x190] sm:$0xff]
  %v1052 = vld [vmem:[%s10 + $0x198] sm:$0xff]
  %v1053 = vld [vmem:[%s10 + $0x1a0] sm:$0xff]
  %v1054 = vld [vmem:[%s10 + $0x1a8] sm:$0xff]
  %v1055 = vld [vmem:[%s10 + $0x1b0] sm:$0xff]
  %v1056 = vld [vmem:[%s10 + $0x1b8] sm:$0xff]
  %v1057 = vld [vmem:[%s10 + $0x1c0] sm:$0xff]
  %v1058 = vld [vmem:[%s10 + $0x1c8] sm:$0xff]
  %v1059 = vld [vmem:[%s10 + $0x1d0] sm:$0xff]
  %v1060 = vld [vmem:[%s10 + $0x1d8] sm:$0xff]
  %v1061 = vld [vmem:[%s10 + $0x1e0] sm:$0xff]
  %v1062 = vld [vmem:[%s10 + $0x1e8] sm:$0xff]
  %v1063 = vld [vmem:[%s10 + $0x1f0] sm:$0xff]
  %v1064 = vld [vmem:[%s10 + $0x1f8] sm:$0xff]
  %v1065 = vmul.f32 %v997, %v1001
  %v1066 = vmul.f32 %v998, %v1002
  %v1067 = vmul.f32 %v999, %v1003
  %v1068 = vmul.f32 %v1000, %v1004
  %v1069 = vmul.f32 %v997, %v1005
  %v1070 = vmul.f32 %v998, %v1006
  %v1071 = vmul.f32 %v999, %v1007
  %v1072 = vmul.f32 %v1000, %v1008
  %v1073 = vmul.f32 %v997, %v1009
  %v1074 = vmul.f32 %v998, %v1010
  %v1075 = vmul.f32 %v999, %v1011
  %v1076 = vmul.f32 %v1000, %v1012
  %v1077 = vmul.f32 %v997, %v1013
  %v1078 = vmul.f32 %v998, %v1014
  %v1079 = vmul.f32 %v999, %v1015
  %v1080 = vmul.f32 %v1000, %v1016
  %v1081 = vmul.f32 %v997, %v1017
  %v1082 = vmul.f32 %v998, %v1018
  %v1083 = vmul.f32 %v999, %v1019
  %v1084 = vmul.f32 %v1000, %v1020
  %v1085 = vmul.f32 %v997, %v1021
  %v1086 = vmul.f32 %v998, %v1022
  %v1087 = vmul.f32 %v999, %v1023
  %v1088 = vmul.f32 %v1000, %v1024
  %v1089 = vmul.f32 %v997, %v1025
  %v1090 = vmul.f32 %v998, %v1026
  %v1091 = vmul.f32 %v999, %v1027
  %v1092 = vmul.f32 %v1000, %v1028
  %v1093 = vmul.f32 %v997, %v1029
  %v1094 = vmul.f32 %v998, %v1030
  %v1095 = vmul.f32 %v999, %v1031
  %v1096 = vmul.f32 %v1000, %v1032
  %v1097 = vmul.f32 %v997, %v1033
  %v1098 = vmul.f32 %v998, %v1034
  %v1099 = vmul.f32 %v999, %v1035
  %v1100 = vmul.f32 %v1000, %v1036
  %v1101 = vmul.f32 %v997, %v1037
  %v1102 = vmul.f32 %v998, %v1038
  %v1103 = vmul.f32 %v999, %v1039
  %v1104 = vmul.f32 %v1000, %v1040
  %v1105 = vmul.f32 %v997, %v1041
  %v1106 = vmul.f32 %v998, %v1042
  %v1107 = vmul.f32 %v999, %v1043
  %v1108 = vmul.f32 %v1000, %v1044
  %v1109 = vmul.f32 %v997, %v1045
  %v1110 = vmul.f32 %v998, %v1046
  %v1111 = vmul.f32 %v999, %v1047
  %v1112 = vmul.f32 %v1000, %v1048
  %v1113 = vmul.f32 %v997, %v1049
  %v1114 = vmul.f32 %v998, %v1050
  %v1115 = vmul.f32 %v999, %v1051
  %v1116 = vmul.f32 %v1000, %v1052
  %v1117 = vmul.f32 %v997, %v1053
  %v1118 = vmul.f32 %v998, %v1054
  %v1119 = vmul.f32 %v999, %v1055
  %v1120 = vmul.f32 %v1000, %v1056
  %v1121 = vmul.f32 %v997, %v1057
  %v1122 = vmul.f32 %v998, %v1058
  %v1123 = vmul.f32 %v999, %v1059
  %v1124 = vmul.f32 %v1000, %v1060
  %v1125 = vmul.f32 %v997, %v1061
  %v1126 = vmul.f32 %v998, %v1062
  %v1127 = vmul.f32 %v999, %v1063
  %v1128 = vmul.f32 %v1000, %v1064
  %1129 = vst [vmem:[#allocation2] sm:$0xff] %v1065
  %1130 = vst [vmem:[#allocation2 + $0x8] sm:$0xff] %v1066
  %1131 = vst [vmem:[#allocation2 + $0x10] sm:$0xff] %v1067
  %1132 = vst [vmem:[#allocation2 + $0x18] sm:$0xff] %v1068
  %1133 = vst [vmem:[#allocation2 + $0x20] sm:$0xff] %v1069
  %1134 = vst [vmem:[#allocation2 + $0x28] sm:$0xff] %v1070
  %1135 = vst [vmem:[#allocation2 + $0x30] sm:$0xff] %v1071
  %1136 = vst [vmem:[#allocation2 + $0x38] sm:$0xff] %v1072
  %1137 = vst [vmem:[#allocation2 + $0x40] sm:$0xff] %v1073
  %1138 = vst [vmem:[#allocation2 + $0x48] sm:$0xff] %v1074
  %1139 = vst [vmem:[#allocation2 + $0x50] sm:$0xff] %v1075
  %1140 = vst [vmem:[#allocation2 + $0x58] sm:$0xff] %v1076
  %1141 = vst [vmem:[#allocation2 + $0x60] sm:$0xff] %v1077
  %1142 = vst [vmem:[#allocation2 + $0x68] sm:$0xff] %v1078
  %1143 = vst [vmem:[#allocation2 + $0x70] sm:$0xff] %v1079
  %1144 = vst [vmem:[#allocation2 + $0x78] sm:$0xff] %v1080
  %1145 = vst [vmem:[#allocation2 + $0x80] sm:$0xff] %v1081
  %1146 = vst [vmem:[#allocation2 + $0x88] sm:$0xff] %v1082
  %1147 = vst [vmem:[#allocation2 + $0x90] sm:$0xff] %v1083
  %1148 = vst [vmem:[#allocation2 + $0x98] sm:$0xff] %v1084
  %1149 = vst [vmem:[#allocation2 + $0xa0] sm:$0xff] %v1085
  %1150 = vst [vmem:[#allocation2 + $0xa8] sm:$0xff] %v1086
  %1151 = vst [vmem:[#allocation2 + $0xb0] sm:$0xff] %v1087
  %1152 = vst [vmem:[#allocation2 + $0xb8] sm:$0xff] %v1088
  %1153 = vst [vmem:[#allocation2 + $0xc0] sm:$0xff] %v1089
  %1154 = vst [vmem:[#allocation2 + $0xc8] sm:$0xff] %v1090
  %1155 = vst [vmem:[#allocation2 + $0xd0] sm:$0xff] %v1091
  %1156 = vst [vmem:[#allocation2 + $0xd8] sm:$0xff] %v1092
  %1157 = vst [vmem:[#allocation2 + $0xe0] sm:$0xff] %v1093
  %1158 = vst [vmem:[#allocation2 + $0xe8] sm:$0xff] %v1094
  %1159 = vst [vmem:[#allocation2 + $0xf0] sm:$0xff] %v1095
  %1160 = vst [vmem:[#allocation2 + $0xf8] sm:$0xff] %v1096
  %1161 = vst [vmem:[#allocation2 + $0x100] sm:$0xff] %v1097
  %1162 = vst [vmem:[#allocation2 + $0x108] sm:$0xff] %v1098
  %1163 = vst [vmem:[#allocation2 + $0x110] sm:$0xff] %v1099
  %1164 = vst [vmem:[#allocation2 + $0x118] sm:$0xff] %v1100
  %1165 = vst [vmem:[#allocation2 + $0x120] sm:$0xff] %v1101
  %1166 = vst [vmem:[#allocation2 + $0x128] sm:$0xff] %v1102
  %1167 = vst [vmem:[#allocation2 + $0x130] sm:$0xff] %v1103
  %1168 = vst [vmem:[#allocation2 + $0x138] sm:$0xff] %v1104
  %1169 = vst [vmem:[#allocation2 + $0x140] sm:$0xff] %v1105
  %1170 = vst [vmem:[#allocation2 + $0x148] sm:$0xff] %v1106
  %1171 = vst [vmem:[#allocation2 + $0x150] sm:$0xff] %v1107
  %1172 = vst [vmem:[#allocation2 + $0x158] sm:$0xff] %v1108
  %1173 = vst [vmem:[#allocation2 + $0x160] sm:$0xff] %v1109
  %1174 = vst [vmem:[#allocation2 + $0x168] sm:$0xff] %v1110
  %1175 = vst [vmem:[#allocation2 + $0x170] sm:$0xff] %v1111
  %1176 = vst [vmem:[#allocation2 + $0x178] sm:$0xff] %v1112
  %1177 = vst [vmem:[#allocation2 + $0x180] sm:$0xff] %v1113
  %1178 = vst [vmem:[#allocation2 + $0x188] sm:$0xff] %v1114
  %1179 = vst [vmem:[#allocation2 + $0x190] sm:$0xff] %v1115
  %1180 = vst [vmem:[#allocation2 + $0x198] sm:$0xff] %v1116
  %1181 = vst [vmem:[#allocation2 + $0x1a0] sm:$0xff] %v1117
  %1182 = vst [vmem:[#allocation2 + $0x1a8] sm:$0xff] %v1118
  %1183 = vst [vmem:[#allocation2 + $0x1b0] sm:$0xff] %v1119
  %1184 = vst [vmem:[#allocation2 + $0x1b8] sm:$0xff] %v1120
  %1185 = vst [vmem:[#allocation2 + $0x1c0] sm:$0xff] %v1121
  %1186 = vst [vmem:[#allocation2 + $0x1c8] sm:$0xff] %v1122
  %1187 = vst [vmem:[#allocation2 + $0x1d0] sm:$0xff] %v1123
  %1188 = vst [vmem:[#allocation2 + $0x1d8] sm:$0xff] %v1124
  %1189 = vst [vmem:[#allocation2 + $0x1e0] sm:$0xff] %v1125
  %1190 = vst [vmem:[#allocation2 + $0x1e8] sm:$0xff] %v1126
  %1191 = vst [vmem:[#allocation2 + $0x1f0] sm:$0xff] %v1127
  %1192 = vst [vmem:[#allocation2 + $0x1f8] sm:$0xff] %v1128
  %v1193 = vld [vmem:[%s2] sm:$0xff]
  %v1194 = vld [vmem:[#allocation2] sm:$0xff]
  %v1195 = vld [vmem:[#allocation2 + $0x8] sm:$0xff]
  %v1196 = vld [vmem:[#allocation2 + $0x10] sm:$0xff]
  %v1197 = vld [vmem:[#allocation2 + $0x18] sm:$0xff]
  %v1198 = vld [vmem:[#allocation2 + $0x20] sm:$0xff]
  %v1199 = vld [vmem:[#allocation2 + $0x28] sm:$0xff]
  %v1200 = vld [vmem:[#allocation2 + $0x30] sm:$0xff]
  %v1201 = vld [vmem:[#allocation2 + $0x38] sm:$0xff]
  %v1202 = vld [vmem:[#allocation2 + $0x40] sm:$0xff]
  %v1203 = vld [vmem:[#allocation2 + $0x48] sm:$0xff]
  %v1204 = vld [vmem:[#allocation2 + $0x50] sm:$0xff]
  %v1205 = vld [vmem:[#allocation2 + $0x58] sm:$0xff]
  %v1206 = vld [vmem:[#allocation2 + $0x60] sm:$0xff]
  %v1207 = vld [vmem:[#allocation2 + $0x68] sm:$0xff]
  %v1208 = vld [vmem:[#allocation2 + $0x70] sm:$0xff]
  %v1209 = vld [vmem:[#allocation2 + $0x78] sm:$0xff]
  %v1210 = vld [vmem:[#allocation2 + $0x80] sm:$0xff]
  %v1211 = vld [vmem:[#allocation2 + $0x88] sm:$0xff]
  %v1212 = vld [vmem:[#allocation2 + $0x90] sm:$0xff]
  %v1213 = vld [vmem:[#allocation2 + $0x98] sm:$0xff]
  %v1214 = vld [vmem:[#allocation2 + $0xa0] sm:$0xff]
  %v1215 = vld [vmem:[#allocation2 + $0xa8] sm:$0xff]
  %v1216 = vld [vmem:[#allocation2 + $0xb0] sm:$0xff]
  %v1217 = vld [vmem:[#allocation2 + $0xb8] sm:$0xff]
  %v1218 = vld [vmem:[#allocation2 + $0xc0] sm:$0xff]
  %v1219 = vld [vmem:[#allocation2 + $0xc8] sm:$0xff]
  %v1220 = vld [vmem:[#allocation2 + $0xd0] sm:$0xff]
  %v1221 = vld [vmem:[#allocation2 + $0xd8] sm:$0xff]
  %v1222 = vld [vmem:[#allocation2 + $0xe0] sm:$0xff]
  %v1223 = vld [vmem:[#allocation2 + $0xe8] sm:$0xff]
  %v1224 = vld [vmem:[#allocation2 + $0xf0] sm:$0xff]
  %v1225 = vld [vmem:[#allocation2 + $0xf8] sm:$0xff]
  %v1226 = vld [vmem:[#allocation2 + $0x100] sm:$0xff]
  %v1227 = vld [vmem:[#allocation2 + $0x108] sm:$0xff]
  %v1228 = vld [vmem:[#allocation2 + $0x110] sm:$0xff]
  %v1229 = vld [vmem:[#allocation2 + $0x118] sm:$0xff]
  %v1230 = vld [vmem:[#allocation2 + $0x120] sm:$0xff]
  %v1231 = vld [vmem:[#allocation2 + $0x128] sm:$0xff]
  %v1232 = vld [vmem:[#allocation2 + $0x130] sm:$0xff]
  %v1233 = vld [vmem:[#allocation2 + $0x138] sm:$0xff]
  %v1234 = vld [vmem:[#allocation2 + $0x140] sm:$0xff]
  %v1235 = vld [vmem:[#allocation2 + $0x148] sm:$0xff]
  %v1236 = vld [vmem:[#allocation2 + $0x150] sm:$0xff]
  %v1237 = vld [vmem:[#allocation2 + $0x158] sm:$0xff]
  %v1238 = vld [vmem:[#allocation2 + $0x160] sm:$0xff]
  %v1239 = vld [vmem:[#allocation2 + $0x168] sm:$0xff]
  %v1240 = vld [vmem:[#allocation2 + $0x170] sm:$0xff]
  %v1241 = vld [vmem:[#allocation2 + $0x178] sm:$0xff]
  %v1242 = vld [vmem:[#allocation2 + $0x180] sm:$0xff]
  %v1243 = vld [vmem:[#allocation2 + $0x188] sm:$0xff]
  %v1244 = vld [vmem:[#allocation2 + $0x190] sm:$0xff]
  %v1245 = vld [vmem:[#allocation2 + $0x198] sm:$0xff]
  %v1246 = vld [vmem:[#allocation2 + $0x1a0] sm:$0xff]
  %v1247 = vld [vmem:[#allocation2 + $0x1a8] sm:$0xff]
  %v1248 = vld [vmem:[#allocation2 + $0x1b0] sm:$0xff]
  %v1249 = vld [vmem:[#allocation2 + $0x1b8] sm:$0xff]
  %v1250 = vld [vmem:[#allocation2 + $0x1c0] sm:$0xff]
  %v1251 = vld [vmem:[#allocation2 + $0x1c8] sm:$0xff]
  %v1252 = vld [vmem:[#allocation2 + $0x1d0] sm:$0xff]
  %v1253 = vld [vmem:[#allocation2 + $0x1d8] sm:$0xff]
  %v1254 = vld [vmem:[#allocation2 + $0x1e0] sm:$0xff]
  %v1255 = vld [vmem:[#allocation2 + $0x1e8] sm:$0xff]
  %v1256 = vld [vmem:[#allocation2 + $0x1f0] sm:$0xff]
  %v1257 = vld [vmem:[#allocation2 + $0x1f8] sm:$0xff]
  %v1259 = vcombine.high %v1193, %v1193
  %1261 = vmatprep.subr.mxu0 %v1195
  %1262 = vmatpush1.msra.mxu0 %v1194
  %1263 = vmatprep.subr.mxu0 %v1197
  %1264 = vmatpush1.msra.mxu0 %v1196
  %1265 = vmatprep.subr.mxu0 %v1199
  %1266 = vmatpush1.msra.mxu0 %v1198
  %1267 = vmatprep.subr.mxu0 %v1201
  %1268 = vmatpush1.msra.mxu0 %v1200
  %1269 = vmatprep.subr.mxu0 %v1203
  %1270 = vmatpush1.msra.mxu0 %v1202
  %1271 = vmatprep.subr.mxu0 %v1205
  %1272 = vmatpush1.msra.mxu0 %v1204
  %1273 = vmatprep.subr.mxu0 %v1207
  %1274 = vmatpush1.msra.mxu0 %v1206
  %1275 = vmatprep.subr.mxu0 %v1209
  %1276 = vmatpush1.msra.mxu0 %v1208
  %1277 = vmatprep.subr.mxu0 %v1211
  %1278 = vmatpush1.msra.mxu0 %v1210
  %1279 = vmatprep.subr.mxu0 %v1213
  %1280 = vmatpush1.msra.mxu0 %v1212
  %1281 = vmatprep.subr.mxu0 %v1215
  %1282 = vmatpush1.msra.mxu0 %v1214
  %1283 = vmatprep.subr.mxu0 %v1217
  %1284 = vmatpush1.msra.mxu0 %v1216
  %1285 = vmatprep.subr.mxu0 %v1219
  %1286 = vmatpush1.msra.mxu0 %v1218
  %1287 = vmatprep.subr.mxu0 %v1221
  %1288 = vmatpush1.msra.mxu0 %v1220
  %1289 = vmatprep.subr.mxu0 %v1223
  %1290 = vmatpush1.msra.mxu0 %v1222
  %1291 = vmatprep.subr.mxu0 %v1225
  %1292 = vmatpush1.msra.mxu0 %v1224
  %1293 = vmatprep.subr.mxu0 %v1227
  %1294 = vmatpush1.msra.mxu0 %v1226
  %1295 = vmatprep.subr.mxu0 %v1229
  %1296 = vmatpush1.msra.mxu0 %v1228
  %1297 = vmatprep.subr.mxu0 %v1231
  %1298 = vmatpush1.msra.mxu0 %v1230
  %1299 = vmatprep.subr.mxu0 %v1233
  %1300 = vmatpush1.msra.mxu0 %v1232
  %1301 = vmatprep.subr.mxu0 %v1235
  %1302 = vmatpush1.msra.mxu0 %v1234
  %1303 = vmatprep.subr.mxu0 %v1237
  %1304 = vmatpush1.msra.mxu0 %v1236
  %1305 = vmatprep.subr.mxu0 %v1239
  %1306 = vmatpush1.msra.mxu0 %v1238
  %1307 = vmatprep.subr.mxu0 %v1241
  %1308 = vmatpush1.msra.mxu0 %v1240
  %1309 = vmatprep.subr.mxu0 %v1243
  %1310 = vmatpush1.msra.mxu0 %v1242
  %1311 = vmatprep.subr.mxu0 %v1245
  %1312 = vmatpush1.msra.mxu0 %v1244
  %1313 = vmatprep.subr.mxu0 %v1247
  %1314 = vmatpush1.msra.mxu0 %v1246
  %1315 = vmatprep.subr.mxu0 %v1249
  %1316 = vmatpush1.msra.mxu0 %v1248
  %1317 = vmatprep.subr.mxu0 %v1251
  %1318 = vmatpush1.msra.mxu0 %v1250
  %1319 = vmatprep.subr.mxu0 %v1253
  %1320 = vmatpush1.msra.mxu0 %v1252
  %1321 = vmatprep.subr.mxu0 %v1255
  %1322 = vmatpush1.msra.mxu0 %v1254
  %1323 = vmatprep.subr.mxu0 %v1257
  %1324 = vmatpush1.msra.mxu0 %v1256
  %1325 = vmatprep.mubr.f32.mxu0 %v1259
  %1326 = vmatmul.mubr.f32.gmra.mrb[0].mxu0 %v1193
  %v1327 = vpop.f32.mrb[0].mxu0
  %v1328 = vadd.f32 0.0, %v1327
  %v1329 = vpop.f32.mrb[0].mxu0
  %v1330 = vadd.f32 0.0, %v1329
  %1331 = vdwg.mxu0
  %v1332 = vrot.slane %v937, 1
  %s1333 = vtos %v1332
  %v1334 = vstv %s1333
  %v1336 = vmul.f32 %v1334, %v938
  %v1337 = vmul.f32 %v1334, %v939
  %v1338 = vmul.f32 %v1334, %v940
  %v1339 = vmul.f32 %v1334, %v941
  %1340 = vrot.lane.b32.xlu0 %v1332, 127
  %v1341 = vpop.permute.xlu0 %1340
  %s1342 = vtos %v1341
  %v1343 = vstv %s1342
  %v1345 = vmul.f32 %v1343, %v942
  %v1346 = vmul.f32 %v1343, %v943
  %v1347 = vmul.f32 %v1343, %v944
  %v1348 = vmul.f32 %v1343, %v945
  %v1349 = vadd.f32 %v1336, %v1345
  %v1350 = vadd.f32 %v1337, %v1346
  %v1351 = vadd.f32 %v1338, %v1347
  %v1352 = vadd.f32 %v1339, %v1348
  %1353 = vrot.lane.b32.xlu0 %v1332, 126
  %v1354 = vpop.permute.xlu0 %1353
  %s1355 = vtos %v1354
  %v1356 = vstv %s1355
  %v1358 = vmul.f32 %v1356, %v946
  %v1359 = vmul.f32 %v1356, %v947
  %v1360 = vmul.f32 %v1356, %v948
  %v1361 = vmul.f32 %v1356, %v949
  %v1362 = vadd.f32 %v1349, %v1358
  %v1363 = vadd.f32 %v1350, %v1359
  %v1364 = vadd.f32 %v1351, %v1360
  %v1365 = vadd.f32 %v1352, %v1361
  %1366 = vrot.lane.b32.xlu0 %v1332, 125
  %v1367 = vpop.permute.xlu0 %1366
  %s1368 = vtos %v1367
  %v1369 = vstv %s1368
  %v1371 = vmul.f32 %v1369, %v950
  %v1372 = vmul.f32 %v1369, %v951
  %v1373 = vmul.f32 %v1369, %v952
  %v1374 = vmul.f32 %v1369, %v953
  %v1375 = vadd.f32 %v1362, %v1371
  %v1376 = vadd.f32 %v1363, %v1372
  %v1377 = vadd.f32 %v1364, %v1373
  %v1378 = vadd.f32 %v1365, %v1374
  %v1379 = vld [vmem:[%s10] sm:$0xff]
  %v1380 = vld [vmem:[%s10 + $0x8] sm:$0xff]
  %v1381 = vld [vmem:[%s10 + $0x10] sm:$0xff]
  %v1382 = vld [vmem:[%s10 + $0x18] sm:$0xff]
  %v1383 = vld [vmem:[%s10 + $0x20] sm:$0xff]
  %v1384 = vld [vmem:[%s10 + $0x28] sm:$0xff]
  %v1385 = vld [vmem:[%s10 + $0x30] sm:$0xff]
  %v1386 = vld [vmem:[%s10 + $0x38] sm:$0xff]
  %v1387 = vld [vmem:[%s10 + $0x40] sm:$0xff]
  %v1388 = vld [vmem:[%s10 + $0x48] sm:$0xff]
  %v1389 = vld [vmem:[%s10 + $0x50] sm:$0xff]
  %v1390 = vld [vmem:[%s10 + $0x58] sm:$0xff]
  %v1391 = vld [vmem:[%s10 + $0x60] sm:$0xff]
  %v1392 = vld [vmem:[%s10 + $0x68] sm:$0xff]
  %v1393 = vld [vmem:[%s10 + $0x70] sm:$0xff]
  %v1394 = vld [vmem:[%s10 + $0x78] sm:$0xff]
  %v1395 = vld [vmem:[%s10 + $0x80] sm:$0xff]
  %v1396 = vld [vmem:[%s10 + $0x88] sm:$0xff]
  %v1397 = vld [vmem:[%s10 + $0x90] sm:$0xff]
  %v1398 = vld [vmem:[%s10 + $0x98] sm:$0xff]
  %v1399 = vld [vmem:[%s10 + $0xa0] sm:$0xff]
  %v1400 = vld [vmem:[%s10 + $0xa8] sm:$0xff]
  %v1401 = vld [vmem:[%s10 + $0xb0] sm:$0xff]
  %v1402 = vld [vmem:[%s10 + $0xb8] sm:$0xff]
  %v1403 = vld [vmem:[%s10 + $0xc0] sm:$0xff]
  %v1404 = vld [vmem:[%s10 + $0xc8] sm:$0xff]
  %v1405 = vld [vmem:[%s10 + $0xd0] sm:$0xff]
  %v1406 = vld [vmem:[%s10 + $0xd8] sm:$0xff]
  %v1407 = vld [vmem:[%s10 + $0xe0] sm:$0xff]
  %v1408 = vld [vmem:[%s10 + $0xe8] sm:$0xff]
  %v1409 = vld [vmem:[%s10 + $0xf0] sm:$0xff]
  %v1410 = vld [vmem:[%s10 + $0xf8] sm:$0xff]
  %v1411 = vld [vmem:[%s10 + $0x100] sm:$0xff]
  %v1412 = vld [vmem:[%s10 + $0x108] sm:$0xff]
  %v1413 = vld [vmem:[%s10 + $0x110] sm:$0xff]
  %v1414 = vld [vmem:[%s10 + $0x118] sm:$0xff]
  %v1415 = vld [vmem:[%s10 + $0x120] sm:$0xff]
  %v1416 = vld [vmem:[%s10 + $0x128] sm:$0xff]
  %v1417 = vld [vmem:[%s10 + $0x130] sm:$0xff]
  %v1418 = vld [vmem:[%s10 + $0x138] sm:$0xff]
  %v1419 = vld [vmem:[%s10 + $0x140] sm:$0xff]
  %v1420 = vld [vmem:[%s10 + $0x148] sm:$0xff]
  %v1421 = vld [vmem:[%s10 + $0x150] sm:$0xff]
  %v1422 = vld [vmem:[%s10 + $0x158] sm:$0xff]
  %v1423 = vld [vmem:[%s10 + $0x160] sm:$0xff]
  %v1424 = vld [vmem:[%s10 + $0x168] sm:$0xff]
  %v1425 = vld [vmem:[%s10 + $0x170] sm:$0xff]
  %v1426 = vld [vmem:[%s10 + $0x178] sm:$0xff]
  %v1427 = vld [vmem:[%s10 + $0x180] sm:$0xff]
  %v1428 = vld [vmem:[%s10 + $0x188] sm:$0xff]
  %v1429 = vld [vmem:[%s10 + $0x190] sm:$0xff]
  %v1430 = vld [vmem:[%s10 + $0x198] sm:$0xff]
  %v1431 = vld [vmem:[%s10 + $0x1a0] sm:$0xff]
  %v1432 = vld [vmem:[%s10 + $0x1a8] sm:$0xff]
  %v1433 = vld [vmem:[%s10 + $0x1b0] sm:$0xff]
  %v1434 = vld [vmem:[%s10 + $0x1b8] sm:$0xff]
  %v1435 = vld [vmem:[%s10 + $0x1c0] sm:$0xff]
  %v1436 = vld [vmem:[%s10 + $0x1c8] sm:$0xff]
  %v1437 = vld [vmem:[%s10 + $0x1d0] sm:$0xff]
  %v1438 = vld [vmem:[%s10 + $0x1d8] sm:$0xff]
  %v1439 = vld [vmem:[%s10 + $0x1e0] sm:$0xff]
  %v1440 = vld [vmem:[%s10 + $0x1e8] sm:$0xff]
  %v1441 = vld [vmem:[%s10 + $0x1f0] sm:$0xff]
  %v1442 = vld [vmem:[%s10 + $0x1f8] sm:$0xff]
  %v1443 = vmul.f32 %v1375, %v1379
  %v1444 = vmul.f32 %v1376, %v1380
  %v1445 = vmul.f32 %v1377, %v1381
  %v1446 = vmul.f32 %v1378, %v1382
  %v1447 = vmul.f32 %v1375, %v1383
  %v1448 = vmul.f32 %v1376, %v1384
  %v1449 = vmul.f32 %v1377, %v1385
  %v1450 = vmul.f32 %v1378, %v1386
  %v1451 = vmul.f32 %v1375, %v1387
  %v1452 = vmul.f32 %v1376, %v1388
  %v1453 = vmul.f32 %v1377, %v1389
  %v1454 = vmul.f32 %v1378, %v1390
  %v1455 = vmul.f32 %v1375, %v1391
  %v1456 = vmul.f32 %v1376, %v1392
  %v1457 = vmul.f32 %v1377, %v1393
  %v1458 = vmul.f32 %v1378, %v1394
  %v1459 = vmul.f32 %v1375, %v1395
  %v1460 = vmul.f32 %v1376, %v1396
  %v1461 = vmul.f32 %v1377, %v1397
  %v1462 = vmul.f32 %v1378, %v1398
  %v1463 = vmul.f32 %v1375, %v1399
  %v1464 = vmul.f32 %v1376, %v1400
  %v1465 = vmul.f32 %v1377, %v1401
  %v1466 = vmul.f32 %v1378, %v1402
  %v1467 = vmul.f32 %v1375, %v1403
  %v1468 = vmul.f32 %v1376, %v1404
  %v1469 = vmul.f32 %v1377, %v1405
  %v1470 = vmul.f32 %v1378, %v1406
  %v1471 = vmul.f32 %v1375, %v1407
  %v1472 = vmul.f32 %v1376, %v1408
  %v1473 = vmul.f32 %v1377, %v1409
  %v1474 = vmul.f32 %v1378, %v1410
  %v1475 = vmul.f32 %v1375, %v1411
  %v1476 = vmul.f32 %v1376, %v1412
  %v1477 = vmul.f32 %v1377, %v1413
  %v1478 = vmul.f32 %v1378, %v1414
  %v1479 = vmul.f32 %v1375, %v1415
  %v1480 = vmul.f32 %v1376, %v1416
  %v1481 = vmul.f32 %v1377, %v1417
  %v1482 = vmul.f32 %v1378, %v1418
  %v1483 = vmul.f32 %v1375, %v1419
  %v1484 = vmul.f32 %v1376, %v1420
  %v1485 = vmul.f32 %v1377, %v1421
  %v1486 = vmul.f32 %v1378, %v1422
  %v1487 = vmul.f32 %v1375, %v1423
  %v1488 = vmul.f32 %v1376, %v1424
  %v1489 = vmul.f32 %v1377, %v1425
  %v1490 = vmul.f32 %v1378, %v1426
  %v1491 = vmul.f32 %v1375, %v1427
  %v1492 = vmul.f32 %v1376, %v1428
  %v1493 = vmul.f32 %v1377, %v1429
  %v1494 = vmul.f32 %v1378, %v1430
  %v1495 = vmul.f32 %v1375, %v1431
  %v1496 = vmul.f32 %v1376, %v1432
  %v1497 = vmul.f32 %v1377, %v1433
  %v1498 = vmul.f32 %v1378, %v1434
  %v1499 = vmul.f32 %v1375, %v1435
  %v1500 = vmul.f32 %v1376, %v1436
  %v1501 = vmul.f32 %v1377, %v1437
  %v1502 = vmul.f32 %v1378, %v1438
  %v1503 = vmul.f32 %v1375, %v1439
  %v1504 = vmul.f32 %v1376, %v1440
  %v1505 = vmul.f32 %v1377, %v1441
  %v1506 = vmul.f32 %v1378, %v1442
  %s1507 = scalar_lea.vmem [#allocation2], 512
  %1508 = vst [vmem:[%s1507] sm:$0xff] %v1443
  %1509 = vst [vmem:[%s1507 + $0x8] sm:$0xff] %v1444
  %1510 = vst [vmem:[%s1507 + $0x10] sm:$0xff] %v1445
  %1511 = vst [vmem:[%s1507 + $0x18] sm:$0xff] %v1446
  %1512 = vst [vmem:[%s1507 + $0x20] sm:$0xff] %v1447
  %1513 = vst [vmem:[%s1507 + $0x28] sm:$0xff] %v1448
  %1514 = vst [vmem:[%s1507 + $0x30] sm:$0xff] %v1449
  %1515 = vst [vmem:[%s1507 + $0x38] sm:$0xff] %v1450
  %1516 = vst [vmem:[%s1507 + $0x40] sm:$0xff] %v1451
  %1517 = vst [vmem:[%s1507 + $0x48] sm:$0xff] %v1452
  %1518 = vst [vmem:[%s1507 + $0x50] sm:$0xff] %v1453
  %1519 = vst [vmem:[%s1507 + $0x58] sm:$0xff] %v1454
  %1520 = vst [vmem:[%s1507 + $0x60] sm:$0xff] %v1455
  %1521 = vst [vmem:[%s1507 + $0x68] sm:$0xff] %v1456
  %1522 = vst [vmem:[%s1507 + $0x70] sm:$0xff] %v1457
  %1523 = vst [vmem:[%s1507 + $0x78] sm:$0xff] %v1458
  %1524 = vst [vmem:[%s1507 + $0x80] sm:$0xff] %v1459
  %1525 = vst [vmem:[%s1507 + $0x88] sm:$0xff] %v1460
  %1526 = vst [vmem:[%s1507 + $0x90] sm:$0xff] %v1461
  %1527 = vst [vmem:[%s1507 + $0x98] sm:$0xff] %v1462
  %1528 = vst [vmem:[%s1507 + $0xa0] sm:$0xff] %v1463
  %1529 = vst [vmem:[%s1507 + $0xa8] sm:$0xff] %v1464
  %1530 = vst [vmem:[%s1507 + $0xb0] sm:$0xff] %v1465
  %1531 = vst [vmem:[%s1507 + $0xb8] sm:$0xff] %v1466
  %1532 = vst [vmem:[%s1507 + $0xc0] sm:$0xff] %v1467
  %1533 = vst [vmem:[%s1507 + $0xc8] sm:$0xff] %v1468
  %1534 = vst [vmem:[%s1507 + $0xd0] sm:$0xff] %v1469
  %1535 = vst [vmem:[%s1507 + $0xd8] sm:$0xff] %v1470
  %1536 = vst [vmem:[%s1507 + $0xe0] sm:$0xff] %v1471
  %1537 = vst [vmem:[%s1507 + $0xe8] sm:$0xff] %v1472
  %1538 = vst [vmem:[%s1507 + $0xf0] sm:$0xff] %v1473
  %1539 = vst [vmem:[%s1507 + $0xf8] sm:$0xff] %v1474
  %1540 = vst [vmem:[%s1507 + $0x100] sm:$0xff] %v1475
  %1541 = vst [vmem:[%s1507 + $0x108] sm:$0xff] %v1476
  %1542 = vst [vmem:[%s1507 + $0x110] sm:$0xff] %v1477
  %1543 = vst [vmem:[%s1507 + $0x118] sm:$0xff] %v1478
  %1544 = vst [vmem:[%s1507 + $0x120] sm:$0xff] %v1479
  %1545 = vst [vmem:[%s1507 + $0x128] sm:$0xff] %v1480
  %1546 = vst [vmem:[%s1507 + $0x130] sm:$0xff] %v1481
  %1547 = vst [vmem:[%s1507 + $0x138] sm:$0xff] %v1482
  %1548 = vst [vmem:[%s1507 + $0x140] sm:$0xff] %v1483
  %1549 = vst [vmem:[%s1507 + $0x148] sm:$0xff] %v1484
  %1550 = vst [vmem:[%s1507 + $0x150] sm:$0xff] %v1485
  %1551 = vst [vmem:[%s1507 + $0x158] sm:$0xff] %v1486
  %1552 = vst [vmem:[%s1507 + $0x160] sm:$0xff] %v1487
  %1553 = vst [vmem:[%s1507 + $0x168] sm:$0xff] %v1488
  %1554 = vst [vmem:[%s1507 + $0x170] sm:$0xff] %v1489
  %1555 = vst [vmem:[%s1507 + $0x178] sm:$0xff] %v1490
  %1556 = vst [vmem:[%s1507 + $0x180] sm:$0xff] %v1491
  %1557 = vst [vmem:[%s1507 + $0x188] sm:$0xff] %v1492
  %1558 = vst [vmem:[%s1507 + $0x190] sm:$0xff] %v1493
  %1559 = vst [vmem:[%s1507 + $0x198] sm:$0xff] %v1494
  %1560 = vst [vmem:[%s1507 + $0x1a0] sm:$0xff] %v1495
  %1561 = vst [vmem:[%s1507 + $0x1a8] sm:$0xff] %v1496
  %1562 = vst [vmem:[%s1507 + $0x1b0] sm:$0xff] %v1497
  %1563 = vst [vmem:[%s1507 + $0x1b8] sm:$0xff] %v1498
  %1564 = vst [vmem:[%s1507 + $0x1c0] sm:$0xff] %v1499
  %1565 = vst [vmem:[%s1507 + $0x1c8] sm:$0xff] %v1500
  %1566 = vst [vmem:[%s1507 + $0x1d0] sm:$0xff] %v1501
  %1567 = vst [vmem:[%s1507 + $0x1d8] sm:$0xff] %v1502
  %1568 = vst [vmem:[%s1507 + $0x1e0] sm:$0xff] %v1503
  %1569 = vst [vmem:[%s1507 + $0x1e8] sm:$0xff] %v1504
  %1570 = vst [vmem:[%s1507 + $0x1f0] sm:$0xff] %v1505
  %1571 = vst [vmem:[%s1507 + $0x1f8] sm:$0xff] %v1506
  %v1572 = vld [vmem:[%s2 + $0x8] sm:$0xff]
  %v1573 = vld [vmem:[%s1507] sm:$0xff]
  %v1574 = vld [vmem:[%s1507 + $0x8] sm:$0xff]
  %v1575 = vld [vmem:[%s1507 + $0x10] sm:$0xff]
  %v1576 = vld [vmem:[%s1507 + $0x18] sm:$0xff]
  %v1577 = vld [vmem:[%s1507 + $0x20] sm:$0xff]
  %v1578 = vld [vmem:[%s1507 + $0x28] sm:$0xff]
  %v1579 = vld [vmem:[%s1507 + $0x30] sm:$0xff]
  %v1580 = vld [vmem:[%s1507 + $0x38] sm:$0xff]
  %v1581 = vld [vmem:[%s1507 + $0x40] sm:$0xff]
  %v1582 = vld [vmem:[%s1507 + $0x48] sm:$0xff]
  %v1583 = vld [vmem:[%s1507 + $0x50] sm:$0xff]
  %v1584 = vld [vmem:[%s1507 + $0x58] sm:$0xff]
  %v1585 = vld [vmem:[%s1507 + $0x60] sm:$0xff]
  %v1586 = vld [vmem:[%s1507 + $0x68] sm:$0xff]
  %v1587 = vld [vmem:[%s1507 + $0x70] sm:$0xff]
  %v1588 = vld [vmem:[%s1507 + $0x78] sm:$0xff]
  %v1589 = vld [vmem:[%s1507 + $0x80] sm:$0xff]
  %v1590 = vld [vmem:[%s1507 + $0x88] sm:$0xff]
  %v1591 = vld [vmem:[%s1507 + $0x90] sm:$0xff]
  %v1592 = vld [vmem:[%s1507 + $0x98] sm:$0xff]
  %v1593 = vld [vmem:[%s1507 + $0xa0] sm:$0xff]
  %v1594 = vld [vmem:[%s1507 + $0xa8] sm:$0xff]
  %v1595 = vld [vmem:[%s1507 + $0xb0] sm:$0xff]
  %v1596 = vld [vmem:[%s1507 + $0xb8] sm:$0xff]
  %v1597 = vld [vmem:[%s1507 + $0xc0] sm:$0xff]
  %v1598 = vld [vmem:[%s1507 + $0xc8] sm:$0xff]
  %v1599 = vld [vmem:[%s1507 + $0xd0] sm:$0xff]
  %v1600 = vld [vmem:[%s1507 + $0xd8] sm:$0xff]
  %v1601 = vld [vmem:[%s1507 + $0xe0] sm:$0xff]
  %v1602 = vld [vmem:[%s1507 + $0xe8] sm:$0xff]
  %v1603 = vld [vmem:[%s1507 + $0xf0] sm:$0xff]
  %v1604 = vld [vmem:[%s1507 + $0xf8] sm:$0xff]
  %v1605 = vld [vmem:[%s1507 + $0x100] sm:$0xff]
  %v1606 = vld [vmem:[%s1507 + $0x108] sm:$0xff]
  %v1607 = vld [vmem:[%s1507 + $0x110] sm:$0xff]
  %v1608 = vld [vmem:[%s1507 + $0x118] sm:$0xff]
  %v1609 = vld [vmem:[%s1507 + $0x120] sm:$0xff]
  %v1610 = vld [vmem:[%s1507 + $0x128] sm:$0xff]
  %v1611 = vld [vmem:[%s1507 + $0x130] sm:$0xff]
  %v1612 = vld [vmem:[%s1507 + $0x138] sm:$0xff]
  %v1613 = vld [vmem:[%s1507 + $0x140] sm:$0xff]
  %v1614 = vld [vmem:[%s1507 + $0x148] sm:$0xff]
  %v1615 = vld [vmem:[%s1507 + $0x150] sm:$0xff]
  %v1616 = vld [vmem:[%s1507 + $0x158] sm:$0xff]
  %v1617 = vld [vmem:[%s1507 + $0x160] sm:$0xff]
  %v1618 = vld [vmem:[%s1507 + $0x168] sm:$0xff]
  %v1619 = vld [vmem:[%s1507 + $0x170] sm:$0xff]
  %v1620 = vld [vmem:[%s1507 + $0x178] sm:$0xff]
  %v1621 = vld [vmem:[%s1507 + $0x180] sm:$0xff]
  %v1622 = vld [vmem:[%s1507 + $0x188] sm:$0xff]
  %v1623 = vld [vmem:[%s1507 + $0x190] sm:$0xff]
  %v1624 = vld [vmem:[%s1507 + $0x198] sm:$0xff]
  %v1625 = vld [vmem:[%s1507 + $0x1a0] sm:$0xff]
  %v1626 = vld [vmem:[%s1507 + $0x1a8] sm:$0xff]
  %v1627 = vld [vmem:[%s1507 + $0x1b0] sm:$0xff]
  %v1628 = vld [vmem:[%s1507 + $0x1b8] sm:$0xff]
  %v1629 = vld [vmem:[%s1507 + $0x1c0] sm:$0xff]
  %v1630 = vld [vmem:[%s1507 + $0x1c8] sm:$0xff]
  %v1631 = vld [vmem:[%s1507 + $0x1d0] sm:$0xff]
  %v1632 = vld [vmem:[%s1507 + $0x1d8] sm:$0xff]
  %v1633 = vld [vmem:[%s1507 + $0x1e0] sm:$0xff]
  %v1634 = vld [vmem:[%s1507 + $0x1e8] sm:$0xff]
  %v1635 = vld [vmem:[%s1507 + $0x1f0] sm:$0xff]
  %v1636 = vld [vmem:[%s1507 + $0x1f8] sm:$0xff]
  %v1638 = vcombine.high %v1572, %v1572
  %1640 = vmatprep.subr.mxu0 %v1574
  %1641 = vmatpush1.msra.mxu0 %v1573
  %1642 = vmatprep.subr.mxu0 %v1576
  %1643 = vmatpush1.msra.mxu0 %v1575
  %1644 = vmatprep.subr.mxu0 %v1578
  %1645 = vmatpush1.msra.mxu0 %v1577
  %1646 = vmatprep.subr.mxu0 %v1580
  %1647 = vmatpush1.msra.mxu0 %v1579
  %1648 = vmatprep.subr.mxu0 %v1582
  %1649 = vmatpush1.msra.mxu0 %v1581
  %1650 = vmatprep.subr.mxu0 %v1584
  %1651 = vmatpush1.msra.mxu0 %v1583
  %1652 = vmatprep.subr.mxu0 %v1586
  %1653 = vmatpush1.msra.mxu0 %v1585
  %1654 = vmatprep.subr.mxu0 %v1588
  %1655 = vmatpush1.msra.mxu0 %v1587
  %1656 = vmatprep.subr.mxu0 %v1590
  %1657 = vmatpush1.msra.mxu0 %v1589
  %1658 = vmatprep.subr.mxu0 %v1592
  %1659 = vmatpush1.msra.mxu0 %v1591
  %1660 = vmatprep.subr.mxu0 %v1594
  %1661 = vmatpush1.msra.mxu0 %v1593
  %1662 = vmatprep.subr.mxu0 %v1596
  %1663 = vmatpush1.msra.mxu0 %v1595
  %1664 = vmatprep.subr.mxu0 %v1598
  %1665 = vmatpush1.msra.mxu0 %v1597
  %1666 = vmatprep.subr.mxu0 %v1600
  %1667 = vmatpush1.msra.mxu0 %v1599
  %1668 = vmatprep.subr.mxu0 %v1602
  %1669 = vmatpush1.msra.mxu0 %v1601
  %1670 = vmatprep.subr.mxu0 %v1604
  %1671 = vmatpush1.msra.mxu0 %v1603
  %1672 = vmatprep.subr.mxu0 %v1606
  %1673 = vmatpush1.msra.mxu0 %v1605
  %1674 = vmatprep.subr.mxu0 %v1608
  %1675 = vmatpush1.msra.mxu0 %v1607
  %1676 = vmatprep.subr.mxu0 %v1610
  %1677 = vmatpush1.msra.mxu0 %v1609
  %1678 = vmatprep.subr.mxu0 %v1612
  %1679 = vmatpush1.msra.mxu0 %v1611
  %1680 = vmatprep.subr.mxu0 %v1614
  %1681 = vmatpush1.msra.mxu0 %v1613
  %1682 = vmatprep.subr.mxu0 %v1616
  %1683 = vmatpush1.msra.mxu0 %v1615
  %1684 = vmatprep.subr.mxu0 %v1618
  %1685 = vmatpush1.msra.mxu0 %v1617
  %1686 = vmatprep.subr.mxu0 %v1620
  %1687 = vmatpush1.msra.mxu0 %v1619
  %1688 = vmatprep.subr.mxu0 %v1622
  %1689 = vmatpush1.msra.mxu0 %v1621
  %1690 = vmatprep.subr.mxu0 %v1624
  %1691 = vmatpush1.msra.mxu0 %v1623
  %1692 = vmatprep.subr.mxu0 %v1626
  %1693 = vmatpush1.msra.mxu0 %v1625
  %1694 = vmatprep.subr.mxu0 %v1628
  %1695 = vmatpush1.msra.mxu0 %v1627
  %1696 = vmatprep.subr.mxu0 %v1630
  %1697 = vmatpush1.msra.mxu0 %v1629
  %1698 = vmatprep.subr.mxu0 %v1632
  %1699 = vmatpush1.msra.mxu0 %v1631
  %1700 = vmatprep.subr.mxu0 %v1634
  %1701 = vmatpush1.msra.mxu0 %v1633
  %1702 = vmatprep.subr.mxu0 %v1636
  %1703 = vmatpush1.msra.mxu0 %v1635
  %1704 = vmatprep.mubr.f32.mxu0 %v1638
  %1705 = vmatmul.mubr.f32.gmra.mrb[0].mxu0 %v1572
  %v1706 = vpop.f32.mrb[0].mxu0
  %v1707 = vadd.f32 0.0, %v1706
  %v1708 = vpop.f32.mrb[0].mxu0
  %v1709 = vadd.f32 0.0, %v1708
  %1710 = vdwg.mxu0
  %v1711 = vld [vmem:[%s11] sm:$0xff]
  %v1712 = vld [vmem:[%s11 + $0x8] sm:$0xff]
  %v1713 = vld [vmem:[%s11 + $0x10] sm:$0xff]
  %v1714 = vld [vmem:[%s11 + $0x18] sm:$0xff]
  %v1715 = vld [vmem:[%s11 + $0x20] sm:$0x1]
  %v1716 = vld [vmem:[%s11 + $0x28] sm:$0x1]
  %v1717 = vld [vmem:[%s11 + $0x30] sm:$0x1]
  %v1718 = vld [vmem:[%s11 + $0x38] sm:$0x1]
  %1719 = vrot.lane.b32.xlu0 %v1328, 17
  %v1720 = vpop.permute.xlu0 %1719
  %1721 = vrot.lane.b32.xlu0 %v1330, 17
  %v1722 = vpop.permute.xlu0 %1721
  %1723 = vrot.lane.b32.xlu0 %v1707, 17
  %v1724 = vpop.permute.xlu0 %1723
  %1725 = vrot.lane.b32.xlu0 %v1709, 17
  %v1726 = vpop.permute.xlu0 %1725
  %v1727 = vlaneseq
  %v1728 = vand.u32 %v1727, 127
  %vm1729 = vcmp.lt.s32.totalorder %v1728, 17
  %v1730 = vsel %vm1729, %v1724, %v1726
  %v1731 = vsel %vm1729, %v1722, %v1724
  %v1732 = vsel %vm1729, %v1720, %v1722
  %v1733 = vsel %vm1729, %v1726, %v1720
  %v1734 = vlaneseq
  %v1735 = vshrl.u32 %v1734, 7
  %v1736 = vsub.s32 0, %v1735
  %v1737 = vrot.slane %v1711, %v1736
  %v1738 = vlaneseq
  %v1739 = vshrl.u32 %v1738, 7
  %v1740 = vsub.s32 0, %v1739
  %v1741 = vrot.slane %v1712, %v1740
  %v1742 = vlaneseq
  %v1743 = vshrl.u32 %v1742, 7
  %v1744 = vsub.s32 0, %v1743
  %v1745 = vrot.slane %v1713, %v1744
  %v1746 = vlaneseq
  %v1747 = vshrl.u32 %v1746, 7
  %v1748 = vsub.s32 0, %v1747
  %v1749 = vrot.slane %v1714, %v1748
  %v1750 = vmul.f32 %v1733, %v1737
  %v1751 = vmul.f32 %v1732, %v1741
  %v1752 = vmul.f32 %v1731, %v1745
  %v1753 = vmul.f32 %v1730, %v1749
  %1754 = vrot.lane.b32.xlu0 %v1328, 16
  %v1755 = vpop.permute.xlu0 %1754
  %1756 = vrot.lane.b32.xlu0 %v1330, 16
  %v1757 = vpop.permute.xlu0 %1756
  %1758 = vrot.lane.b32.xlu0 %v1707, 16
  %v1759 = vpop.permute.xlu0 %1758
  %1760 = vrot.lane.b32.xlu0 %v1709, 16
  %v1761 = vpop.permute.xlu0 %1760
  %vm1762 = vcmp.lt.s32.totalorder %v1728, 16
  %v1763 = vsel %vm1762, %v1759, %v1761
  %v1764 = vsel %vm1762, %v1757, %v1759
  %v1765 = vsel %vm1762, %v1755, %v1757
  %v1766 = vsel %vm1762, %v1761, %v1755
  %v1767 = vlaneseq
  %v1768 = vshrl.u32 %v1767, 7
  %v1769 = vsub.s32 1, %v1768
  %v1770 = vrot.slane %v1711, %v1769
  %v1771 = vlaneseq
  %v1772 = vshrl.u32 %v1771, 7
  %v1773 = vsub.s32 1, %v1772
  %v1774 = vrot.slane %v1712, %v1773
  %v1775 = vlaneseq
  %v1776 = vshrl.u32 %v1775, 7
  %v1777 = vsub.s32 1, %v1776
  %v1778 = vrot.slane %v1713, %v1777
  %v1779 = vlaneseq
  %v1780 = vshrl.u32 %v1779, 7
  %v1781 = vsub.s32 1, %v1780
  %v1782 = vrot.slane %v1714, %v1781
  %v1783 = vmul.f32 %v1766, %v1770
  %v1784 = vmul.f32 %v1765, %v1774
  %v1785 = vmul.f32 %v1764, %v1778
  %v1786 = vmul.f32 %v1763, %v1782
  %1787 = vrot.lane.b32.xlu0 %v1328, 15
  %v1788 = vpop.permute.xlu0 %1787
  %1789 = vrot.lane.b32.xlu0 %v1330, 15
  %v1790 = vpop.permute.xlu0 %1789
  %1791 = vrot.lane.b32.xlu0 %v1707, 15
  %v1792 = vpop.permute.xlu0 %1791
  %1793 = vrot.lane.b32.xlu0 %v1709, 15
  %v1794 = vpop.permute.xlu0 %1793
  %vm1795 = vcmp.lt.s32.totalorder %v1728, 15
  %v1796 = vsel %vm1795, %v1792, %v1794
  %v1797 = vsel %vm1795, %v1790, %v1792
  %v1798 = vsel %vm1795, %v1788, %v1790
  %v1799 = vsel %vm1795, %v1794, %v1788
  %v1800 = vlaneseq
  %v1801 = vshrl.u32 %v1800, 7
  %v1802 = vsub.s32 2, %v1801
  %v1803 = vrot.slane %v1711, %v1802
  %v1804 = vlaneseq
  %v1805 = vshrl.u32 %v1804, 7
  %v1806 = vsub.s32 2, %v1805
  %v1807 = vrot.slane %v1712, %v1806
  %v1808 = vlaneseq
  %v1809 = vshrl.u32 %v1808, 7
  %v1810 = vsub.s32 2, %v1809
  %v1811 = vrot.slane %v1713, %v1810
  %v1812 = vlaneseq
  %v1813 = vshrl.u32 %v1812, 7
  %v1814 = vsub.s32 2, %v1813
  %v1815 = vrot.slane %v1714, %v1814
  %v1816 = vmul.f32 %v1799, %v1803
  %v1817 = vmul.f32 %v1798, %v1807
  %v1818 = vmul.f32 %v1797, %v1811
  %v1819 = vmul.f32 %v1796, %v1815
  %1820 = vrot.lane.b32.xlu0 %v1328, 1
  %v1821 = vpop.permute.xlu0 %1820
  %1822 = vrot.lane.b32.xlu0 %v1330, 1
  %v1823 = vpop.permute.xlu0 %1822
  %1824 = vrot.lane.b32.xlu0 %v1707, 1
  %v1825 = vpop.permute.xlu0 %1824
  %1826 = vrot.lane.b32.xlu0 %v1709, 1
  %v1827 = vpop.permute.xlu0 %1826
  %vm1828 = vcmp.lt.s32.totalorder %v1728, 1
  %v1829 = vsel %vm1828, %v1825, %v1827
  %v1830 = vsel %vm1828, %v1823, %v1825
  %v1831 = vsel %vm1828, %v1821, %v1823
  %v1832 = vsel %vm1828, %v1827, %v1821
  %v1833 = vlaneseq
  %v1834 = vshrl.u32 %v1833, 7
  %v1835 = vsub.s32 3, %v1834
  %v1836 = vrot.slane %v1711, %v1835
  %v1837 = vlaneseq
  %v1838 = vshrl.u32 %v1837, 7
  %v1839 = vsub.s32 3, %v1838
  %v1840 = vrot.slane %v1712, %v1839
  %v1841 = vlaneseq
  %v1842 = vshrl.u32 %v1841, 7
  %v1843 = vsub.s32 3, %v1842
  %v1844 = vrot.slane %v1713, %v1843
  %v1845 = vlaneseq
  %v1846 = vshrl.u32 %v1845, 7
  %v1847 = vsub.s32 3, %v1846
  %v1848 = vrot.slane %v1714, %v1847
  %v1849 = vmul.f32 %v1832, %v1836
  %v1850 = vmul.f32 %v1831, %v1840
  %v1851 = vmul.f32 %v1830, %v1844
  %v1852 = vmul.f32 %v1829, %v1848
  %v1853 = vlaneseq
  %v1854 = vshrl.u32 %v1853, 7
  %v1855 = vsub.s32 4, %v1854
  %v1856 = vrot.slane %v1711, %v1855
  %v1857 = vlaneseq
  %v1858 = vshrl.u32 %v1857, 7
  %v1859 = vsub.s32 4, %v1858
  %v1860 = vrot.slane %v1712, %v1859
  %v1861 = vlaneseq
  %v1862 = vshrl.u32 %v1861, 7
  %v1863 = vsub.s32 4, %v1862
  %v1864 = vrot.slane %v1713, %v1863
  %v1865 = vlaneseq
  %v1866 = vshrl.u32 %v1865, 7
  %v1867 = vsub.s32 4, %v1866
  %v1868 = vrot.slane %v1714, %v1867
  %v1869 = vmul.f32 %v1328, %v1856
  %v1870 = vmul.f32 %v1330, %v1860
  %v1871 = vmul.f32 %v1707, %v1864
  %v1872 = vmul.f32 %v1709, %v1868
  %1873 = vrot.lane.b32.xlu0 %v1328, 127
  %v1874 = vpop.permute.xlu0 %1873
  %1875 = vrot.lane.b32.xlu0 %v1330, 127
  %v1876 = vpop.permute.xlu0 %1875
  %1877 = vrot.lane.b32.xlu0 %v1707, 127
  %v1878 = vpop.permute.xlu0 %1877
  %1879 = vrot.lane.b32.xlu0 %v1709, 127
  %v1880 = vpop.permute.xlu0 %1879
  %vm1881 = vcmp.lt.s32.totalorder %v1728, 127
  %v1882 = vsel %vm1881, %v1878, %v1880
  %v1883 = vsel %vm1881, %v1876, %v1878
  %v1884 = vsel %vm1881, %v1874, %v1876
  %v1885 = vsel %vm1881, %v1880, %v1874
  %v1886 = vlaneseq
  %v1887 = vshrl.u32 %v1886, 7
  %v1888 = vsub.s32 5, %v1887
  %v1889 = vrot.slane %v1711, %v1888
  %v1890 = vlaneseq
  %v1891 = vshrl.u32 %v1890, 7
  %v1892 = vsub.s32 5, %v1891
  %v1893 = vrot.slane %v1712, %v1892
  %v1894 = vlaneseq
  %v1895 = vshrl.u32 %v1894, 7
  %v1896 = vsub.s32 5, %v1895
  %v1897 = vrot.slane %v1713, %v1896
  %v1898 = vlaneseq
  %v1899 = vshrl.u32 %v1898, 7
  %v1900 = vsub.s32 5, %v1899
  %v1901 = vrot.slane %v1714, %v1900
  %v1902 = vmul.f32 %v1884, %v1889
  %v1903 = vmul.f32 %v1883, %v1893
  %v1904 = vmul.f32 %v1882, %v1897
  %v1905 = vmul.f32 %v1885, %v1901
  %1906 = vrot.lane.b32.xlu0 %v1328, 113
  %v1907 = vpop.permute.xlu0 %1906
  %1908 = vrot.lane.b32.xlu0 %v1330, 113
  %v1909 = vpop.permute.xlu0 %1908
  %1910 = vrot.lane.b32.xlu0 %v1707, 113
  %v1911 = vpop.permute.xlu0 %1910
  %1912 = vrot.lane.b32.xlu0 %v1709, 113
  %v1913 = vpop.permute.xlu0 %1912
  %vm1914 = vcmp.lt.s32.totalorder %v1728, 113
  %v1915 = vsel %vm1914, %v1911, %v1913
  %v1916 = vsel %vm1914, %v1909, %v1911
  %v1917 = vsel %vm1914, %v1907, %v1909
  %v1918 = vsel %vm1914, %v1913, %v1907
  %v1919 = vlaneseq
  %v1920 = vshrl.u32 %v1919, 7
  %v1921 = vsub.s32 6, %v1920
  %v1922 = vrot.slane %v1711, %v1921
  %v1923 = vlaneseq
  %v1924 = vshrl.u32 %v1923, 7
  %v1925 = vsub.s32 6, %v1924
  %v1926 = vrot.slane %v1712, %v1925
  %v1927 = vlaneseq
  %v1928 = vshrl.u32 %v1927, 7
  %v1929 = vsub.s32 6, %v1928
  %v1930 = vrot.slane %v1713, %v1929
  %v1931 = vlaneseq
  %v1932 = vshrl.u32 %v1931, 7
  %v1933 = vsub.s32 6, %v1932
  %v1934 = vrot.slane %v1714, %v1933
  %v1935 = vmul.f32 %v1917, %v1922
  %v1936 = vmul.f32 %v1916, %v1926
  %v1937 = vmul.f32 %v1915, %v1930
  %v1938 = vmul.f32 %v1918, %v1934
  %1939 = vrot.lane.b32.xlu0 %v1328, 112
  %v1940 = vpop.permute.xlu0 %1939
  %1941 = vrot.lane.b32.xlu0 %v1330, 112
  %v1942 = vpop.permute.xlu0 %1941
  %1943 = vrot.lane.b32.xlu0 %v1707, 112
  %v1944 = vpop.permute.xlu0 %1943
  %1945 = vrot.lane.b32.xlu0 %v1709, 112
  %v1946 = vpop.permute.xlu0 %1945
  %vm1947 = vcmp.lt.s32.totalorder %v1728, 112
  %v1948 = vsel %vm1947, %v1944, %v1946
  %v1949 = vsel %vm1947, %v1942, %v1944
  %v1950 = vsel %vm1947, %v1940, %v1942
  %v1951 = vsel %vm1947, %v1946, %v1940
  %v1952 = vlaneseq
  %v1953 = vshrl.u32 %v1952, 7
  %v1954 = vsub.s32 7, %v1953
  %v1955 = vrot.slane %v1711, %v1954
  %v1956 = vlaneseq
  %v1957 = vshrl.u32 %v1956, 7
  %v1958 = vsub.s32 7, %v1957
  %v1959 = vrot.slane %v1712, %v1958
  %v1960 = vlaneseq
  %v1961 = vshrl.u32 %v1960, 7
  %v1962 = vsub.s32 7, %v1961
  %v1963 = vrot.slane %v1713, %v1962
  %v1964 = vlaneseq
  %v1965 = vshrl.u32 %v1964, 7
  %v1966 = vsub.s32 7, %v1965
  %v1967 = vrot.slane %v1714, %v1966
  %v1968 = vmul.f32 %v1950, %v1955
  %v1969 = vmul.f32 %v1949, %v1959
  %v1970 = vmul.f32 %v1948, %v1963
  %v1971 = vmul.f32 %v1951, %v1967
  %1972 = vrot.lane.b32.xlu0 %v1328, 111
  %v1973 = vpop.permute.xlu0 %1972
  %1974 = vrot.lane.b32.xlu0 %v1330, 111
  %v1975 = vpop.permute.xlu0 %1974
  %1976 = vrot.lane.b32.xlu0 %v1707, 111
  %v1977 = vpop.permute.xlu0 %1976
  %1978 = vrot.lane.b32.xlu0 %v1709, 111
  %v1979 = vpop.permute.xlu0 %1978
  %vm1980 = vcmp.lt.s32.totalorder %v1728, 111
  %v1981 = vsel %vm1980, %v1977, %v1979
  %v1982 = vsel %vm1980, %v1975, %v1977
  %v1983 = vsel %vm1980, %v1973, %v1975
  %v1984 = vsel %vm1980, %v1979, %v1973
  %v1985 = vlaneseq
  %v1986 = vshrl.u32 %v1985, 7
  %v1987 = vsub.s32 0, %v1986
  %v1988 = vrot.slane %v1715, %v1987
  %v1989 = vlaneseq
  %v1990 = vshrl.u32 %v1989, 7
  %v1991 = vsub.s32 0, %v1990
  %v1992 = vrot.slane %v1716, %v1991
  %v1993 = vlaneseq
  %v1994 = vshrl.u32 %v1993, 7
  %v1995 = vsub.s32 0, %v1994
  %v1996 = vrot.slane %v1717, %v1995
  %v1997 = vlaneseq
  %v1998 = vshrl.u32 %v1997, 7
  %v1999 = vsub.s32 0, %v1998
  %v2000 = vrot.slane %v1718, %v1999
  %v2001 = vmul.f32 %v1983, %v1988
  %v2002 = vmul.f32 %v1982, %v1992
  %v2003 = vmul.f32 %v1981, %v1996
  %v2004 = vmul.f32 %v1984, %v2000
  %v2005 = vld [vmem:[%s2] sm:$0xff]
  %v2006 = vld [vmem:[%s2 + $0x8] sm:$0xff]
  %v2011 = vrot.slane %v1783, 4
  %v2012 = vrot.slane %v1784, 4
  %v2013 = vrot.slane %v1785, 4
  %v2014 = vrot.slane %v1786, 4
  %vm2019 = vcmask 1043456
  %v2020 = vsel %vm2019, %v1750, %v2011
  %v2021 = vsel %vm2019, %v1751, %v2012
  %v2022 = vsel %vm2019, %v1752, %v2013
  %v2023 = vsel %vm2019, %v1753, %v2014
  %2024 = vst [vmem:[#allocation3] sm:$0xff] %v2020
  %2025 = vst [vmem:[#allocation3 + $0x8] sm:$0xff] %v2021
  %2026 = vst [vmem:[#allocation3 + $0x10] sm:$0xff] %v2022
  %2027 = vst [vmem:[#allocation3 + $0x18] sm:$0xff] %v2023
  %v2032 = vrot.slane %v1849, 4
  %v2033 = vrot.slane %v1850, 4
  %v2034 = vrot.slane %v1851, 4
  %v2035 = vrot.slane %v1852, 4
  %v2040 = vsel %vm2019, %v1816, %v2032
  %v2041 = vsel %vm2019, %v1817, %v2033
  %v2042 = vsel %vm2019, %v1818, %v2034
  %v2043 = vsel %vm2019, %v1819, %v2035
  %2044 = vst [vmem:[#allocation3 + $0x20] sm:$0xff] %v2040
  %2045 = vst [vmem:[#allocation3 + $0x28] sm:$0xff] %v2041
  %2046 = vst [vmem:[#allocation3 + $0x30] sm:$0xff] %v2042
  %2047 = vst [vmem:[#allocation3 + $0x38] sm:$0xff] %v2043
  %v2052 = vrot.slane %v1902, 4
  %v2053 = vrot.slane %v1903, 4
  %v2054 = vrot.slane %v1904, 4
  %v2055 = vrot.slane %v1905, 4
  %v2060 = vsel %vm2019, %v1869, %v2052
  %v2061 = vsel %vm2019, %v1870, %v2053
  %v2062 = vsel %vm2019, %v1871, %v2054
  %v2063 = vsel %vm2019, %v1872, %v2055
  %2064 = vst [vmem:[#allocation3 + $0x40] sm:$0xff] %v2060
  %2065 = vst [vmem:[#allocation3 + $0x48] sm:$0xff] %v2061
  %2066 = vst [vmem:[#allocation3 + $0x50] sm:$0xff] %v2062
  %2067 = vst [vmem:[#allocation3 + $0x58] sm:$0xff] %v2063
  %v2072 = vrot.slane %v1968, 4
  %v2073 = vrot.slane %v1969, 4
  %v2074 = vrot.slane %v1970, 4
  %v2075 = vrot.slane %v1971, 4
  %v2080 = vsel %vm2019, %v1935, %v2072
  %v2081 = vsel %vm2019, %v1936, %v2073
  %v2082 = vsel %vm2019, %v1937, %v2074
  %v2083 = vsel %vm2019, %v1938, %v2075
  %2084 = vst [vmem:[#allocation3 + $0x60] sm:$0xff] %v2080
  %2085 = vst [vmem:[#allocation3 + $0x68] sm:$0xff] %v2081
  %2086 = vst [vmem:[#allocation3 + $0x70] sm:$0xff] %v2082
  %2087 = vst [vmem:[#allocation3 + $0x78] sm:$0xff] %v2083
  %v2090 = vcombine.low %v2005, %v2005
  %v2091 = vcombine.low %v2006, %v2006
  %v2094 = vsel %vm2019, %v2001, %v2090
  %v2095 = vsel %vm2019, %v2002, %v2005
  %v2096 = vsel %vm2019, %v2003, %v2091
  %v2097 = vsel %vm2019, %v2004, %v2006
  %2098 = vst [vmem:[#allocation3 + $0x80] sm:$0xff] %v2094
  %2099 = vst [vmem:[#allocation3 + $0x88] sm:$0xff] %v2095
  %2100 = vst [vmem:[#allocation3 + $0x90] sm:$0xff] %v2096
  %2101 = vst [vmem:[#allocation3 + $0x98] sm:$0xff] %v2097
  %v2102 = vld [vmem:[%s12] sm:$0xff]
  %v2103 = vld [vmem:[#allocation3] sm:$0xff]
  %v2104 = vld [vmem:[#allocation3 + $0x8] sm:$0xff]
  %v2105 = vld [vmem:[#allocation3 + $0x10] sm:$0xff]
  %v2106 = vld [vmem:[#allocation3 + $0x18] sm:$0xff]
  %v2107 = vld [vmem:[#allocation3 + $0x20] sm:$0xff]
  %v2108 = vld [vmem:[#allocation3 + $0x28] sm:$0xff]
  %v2109 = vld [vmem:[#allocation3 + $0x30] sm:$0xff]
  %v2110 = vld [vmem:[#allocation3 + $0x38] sm:$0xff]
  %v2111 = vld [vmem:[#allocation3 + $0x40] sm:$0xff]
  %v2112 = vld [vmem:[#allocation3 + $0x48] sm:$0xff]
  %v2113 = vld [vmem:[#allocation3 + $0x50] sm:$0xff]
  %v2114 = vld [vmem:[#allocation3 + $0x58] sm:$0xff]
  %v2115 = vld [vmem:[#allocation3 + $0x60] sm:$0xff]
  %v2116 = vld [vmem:[#allocation3 + $0x68] sm:$0xff]
  %v2117 = vld [vmem:[#allocation3 + $0x70] sm:$0xff]
  %v2118 = vld [vmem:[#allocation3 + $0x78] sm:$0xff]
  %v2119 = vld [vmem:[#allocation3 + $0x80] sm:$0xff]
  %v2120 = vld [vmem:[#allocation3 + $0x88] sm:$0xff]
  %v2121 = vld [vmem:[#allocation3 + $0x90] sm:$0xff]
  %v2122 = vld [vmem:[#allocation3 + $0x98] sm:$0xff]
  %v2123 = vld [vmem:[%s13] sm:$0xff]
  %2125 = vset.pattern.permute.xlu0 0
  %2126 = vperm.xlu0 %2125, %v2123
  %v2127 = vpop.permute.xlu0 %2126
  %vm2129 = vcmask 326656
  %v2131 = vsel %vm2129, %v2102, 0
  %2133 = vmatprep.subr.mxu0 %v2104
  %2134 = vmatpush1.msra.mxu0 %v2103
  %2135 = vmatprep.subr.mxu0 %v2108
  %2136 = vmatpush1.msra.mxu0 %v2107
  %2137 = vmatprep.subr.mxu0 %v2112
  %2138 = vmatpush1.msra.mxu0 %v2111
  %2139 = vmatprep.subr.mxu0 %v2116
  %2140 = vmatpush1.msra.mxu0 %v2115
  %2141 = vmatprep.subr.mxu0 %v2120
  %2142 = vmatpush1.msra.mxu0 %v2119
  %2143 = vmatprep.subr.mxu0 0.0
  %2144 = vmatpush1.msra.mxu0 0.0
  %2145 = vmatprep.subr.mxu0 0.0
  %2146 = vmatpush1.msra.mxu0 0.0
  %2147 = vmatprep.subr.mxu0 0.0
  %2148 = vmatpush1.msra.mxu0 0.0
  %2149 = vmatprep.subr.mxu0 0.0
  %2150 = vmatpush1.msra.mxu0 0.0
  %2151 = vmatprep.subr.mxu0 0.0
  %2152 = vmatpush1.msra.mxu0 0.0
  %2153 = vmatprep.subr.mxu0 0.0
  %2154 = vmatpush1.msra.mxu0 0.0
  %2155 = vmatprep.subr.mxu0 0.0
  %2156 = vmatpush1.msra.mxu0 0.0
  %2157 = vmatprep.subr.mxu0 0.0
  %2158 = vmatpush1.msra.mxu0 0.0
  %2159 = vmatprep.subr.mxu0 0.0
  %2160 = vmatpush1.msra.mxu0 0.0
  %2161 = vmatprep.subr.mxu0 0.0
  %2162 = vmatpush1.msra.mxu0 0.0
  %2163 = vmatprep.subr.mxu0 0.0
  %2164 = vmatpush1.msra.mxu0 0.0
  %2165 = vmatprep.subr.mxu0 0.0
  %2166 = vmatpush1.msra.mxu0 0.0
  %2167 = vmatprep.subr.mxu0 0.0
  %2168 = vmatpush1.msra.mxu0 0.0
  %2169 = vmatprep.subr.mxu0 0.0
  %2170 = vmatpush1.msra.mxu0 0.0
  %2171 = vmatprep.subr.mxu0 0.0
  %2172 = vmatpush1.msra.mxu0 0.0
  %2173 = vmatprep.subr.mxu0 0.0
  %2174 = vmatpush1.msra.mxu0 0.0
  %2175 = vmatprep.subr.mxu0 0.0
  %2176 = vmatpush1.msra.mxu0 0.0
  %2177 = vmatprep.subr.mxu0 0.0
  %2178 = vmatpush1.msra.mxu0 0.0
  %2179 = vmatprep.subr.mxu0 0.0
  %2180 = vmatpush1.msra.mxu0 0.0
  %2181 = vmatprep.subr.mxu0 0.0
  %2182 = vmatpush1.msra.mxu0 0.0
  %2183 = vmatprep.subr.mxu0 0.0
  %2184 = vmatpush1.msra.mxu0 0.0
  %2185 = vmatprep.subr.mxu0 0.0
  %2186 = vmatpush1.msra.mxu0 0.0
  %2187 = vmatprep.subr.mxu0 0.0
  %2188 = vmatpush1.msra.mxu0 0.0
  %2189 = vmatprep.subr.mxu0 0.0
  %2190 = vmatpush1.msra.mxu0 0.0
  %2191 = vmatprep.subr.mxu0 0.0
  %2192 = vmatpush1.msra.mxu0 0.0
  %2193 = vmatprep.subr.mxu0 0.0
  %2194 = vmatpush1.msra.mxu0 0.0
  %2195 = vmatprep.subr.mxu0 0.0
  %2196 = vmatpush1.msra.mxu0 0.0
  %2197 = vmatprep.mubr.f32.mxu0 0.0
  %2198 = vmatmul.mubr.f32.gmra.mrb[0].mxu0 %v2131
  %v2199 = vpop.f32.mrb[0].mxu0
  %v2200 = vadd.f32 %v2127, %v2199
  %v2201 = vpop.f32.mrb[0].mxu0
  %v2202 = vadd.f32 %v2127, %v2201
  %2203 = vdwg.mxu0
  %2204 = vmatprep.subr.mxu0 %v2106
  %2205 = vmatpush1.msra.mxu0 %v2105
  %2206 = vmatprep.subr.mxu0 %v2110
  %2207 = vmatpush1.msra.mxu0 %v2109
  %2208 = vmatprep.subr.mxu0 %v2114
  %2209 = vmatpush1.msra.mxu0 %v2113
  %2210 = vmatprep.subr.mxu0 %v2118
  %2211 = vmatpush1.msra.mxu0 %v2117
  %2212 = vmatprep.subr.mxu0 %v2122
  %2213 = vmatpush1.msra.mxu0 %v2121
  %2214 = vmatprep.subr.mxu0 0.0
  %2215 = vmatpush1.msra.mxu0 0.0
  %2216 = vmatprep.subr.mxu0 0.0
  %2217 = vmatpush1.msra.mxu0 0.0
  %2218 = vmatprep.subr.mxu0 0.0
  %2219 = vmatpush1.msra.mxu0 0.0
  %2220 = vmatprep.subr.mxu0 0.0
  %2221 = vmatpush1.msra.mxu0 0.0
  %2222 = vmatprep.subr.mxu0 0.0
  %2223 = vmatpush1.msra.mxu0 0.0
  %2224 = vmatprep.subr.mxu0 0.0
  %2225 = vmatpush1.msra.mxu0 0.0
  %2226 = vmatprep.subr.mxu0 0.0
  %2227 = vmatpush1.msra.mxu0 0.0
  %2228 = vmatprep.subr.mxu0 0.0
  %2229 = vmatpush1.msra.mxu0 0.0
  %2230 = vmatprep.subr.mxu0 0.0
  %2231 = vmatpush1.msra.mxu0 0.0
  %2232 = vmatprep.subr.mxu0 0.0
  %2233 = vmatpush1.msra.mxu0 0.0
  %2234 = vmatprep.subr.mxu0 0.0
  %2235 = vmatpush1.msra.mxu0 0.0
  %2236 = vmatprep.subr.mxu0 0.0
  %2237 = vmatpush1.msra.mxu0 0.0
  %2238 = vmatprep.subr.mxu0 0.0
  %2239 = vmatpush1.msra.mxu0 0.0
  %2240 = vmatprep.subr.mxu0 0.0
  %2241 = vmatpush1.msra.mxu0 0.0
  %2242 = vmatprep.subr.mxu0 0.0
  %2243 = vmatpush1.msra.mxu0 0.0
  %2244 = vmatprep.subr.mxu0 0.0
  %2245 = vmatpush1.msra.mxu0 0.0
  %2246 = vmatprep.subr.mxu0 0.0
  %2247 = vmatpush1.msra.mxu0 0.0
  %2248 = vmatprep.subr.mxu0 0.0
  %2249 = vmatpush1.msra.mxu0 0.0
  %2250 = vmatprep.subr.mxu0 0.0
  %2251 = vmatpush1.msra.mxu0 0.0
  %2252 = vmatprep.subr.mxu0 0.0
  %2253 = vmatpush1.msra.mxu0 0.0
  %2254 = vmatprep.subr.mxu0 0.0
  %2255 = vmatpush1.msra.mxu0 0.0
  %2256 = vmatprep.subr.mxu0 0.0
  %2257 = vmatpush1.msra.mxu0 0.0
  %2258 = vmatprep.subr.mxu0 0.0
  %2259 = vmatpush1.msra.mxu0 0.0
  %2260 = vmatprep.subr.mxu0 0.0
  %2261 = vmatpush1.msra.mxu0 0.0
  %2262 = vmatprep.subr.mxu0 0.0
  %2263 = vmatpush1.msra.mxu0 0.0
  %2264 = vmatprep.subr.mxu0 0.0
  %2265 = vmatpush1.msra.mxu0 0.0
  %2266 = vmatprep.subr.mxu0 0.0
  %2267 = vmatpush1.msra.mxu0 0.0
  %2268 = vmatprep.mubr.f32.mxu0 0.0
  %2269 = vmatmul.mubr.f32.gmra.mrb[0].mxu0 %v2131
  %v2270 = vpop.f32.mrb[0].mxu0
  %v2271 = vadd.f32 %v2127, %v2270
  %v2272 = vpop.f32.mrb[0].mxu0
  %v2273 = vadd.f32 %v2127, %v2272
  %2274 = vdwg.mxu0
  %s2275 = sld [smem:[#allocation4]]
  %vm2276 = vcmp.gt.f32.partialorder %v2200, 0.0
  %vm2277 = vcmp.gt.f32.partialorder %v2202, 0.0
  %vm2278 = vcmp.gt.f32.partialorder %v2271, 0.0
  %vm2279 = vcmp.gt.f32.partialorder %v2273, 0.0
  %v2280 = vstv %s2275
  %v2281 = vmul.f32 %v2280, %v2200
  %v2282 = vmul.f32 %v2280, %v2202
  %v2283 = vmul.f32 %v2280, %v2271
  %v2284 = vmul.f32 %v2280, %v2273
  %v2285 = vsel %vm2276, %v2200, %v2281
  %v2286 = vsel %vm2277, %v2202, %v2282
  %v2287 = vsel %vm2278, %v2271, %v2283
  %v2288 = vsel %vm2279, %v2273, %v2284
  %2289 = vst [vmem:[%s14] sm:$0xff] %v2285
  %2290 = vst [vmem:[%s14 + $0x8] sm:$0xff] %v2286
  %s2291 = scalar_lea.vmem %s14, 16
  %2292 = vst [vmem:[%s2291] sm:$0xff] %v2287
  %2293 = vst [vmem:[%s2291 + $0x8] sm:$0xff] %v2288
  // Predicated region
  $region58: #{st_gcnn_forward.1} parent=0 // pred_check
    _
  $region59: #{st_gcnn_forward.1} parent=0 // pred_check_branch
    %2295 = sbr.rel (0) target = $region61
  $region60: #{st_gcnn_forward.1} parent=0 // pred_region
    _
  $region61: #{st_gcnn_forward.1} parent=0 // pred_fallthru
    _
  // Predicated region
  $region62: #{st_gcnn_forward.1} parent=0 // pred_check
    _
  $region63: #{st_gcnn_forward.1} parent=0 // pred_check_branch
    %2297 = sbr.rel (0) target = $region65
  $region64: #{st_gcnn_forward.1} parent=0 // pred_region
    _
  $region65: #{st_gcnn_forward.1} parent=0 // pred_fallthru
    _

</llo_original>
